<compile_context>
chip_gen: v7x
topology: tpu7x:2x2x1
jax: 0.10.0
libtpu: 0.0.40
codegen_flags: <defaults>
</compile_context>

<pallas_src>
import jax
import jax.numpy as jnp
from jax import lax
from jax.experimental import pallas as pl
from jax.experimental.pallas import tpu as pltpu


def _attn_head_kernel(x_ref, wqkv_ref, bqkv_ref, f_ref):
    Bb, N, C = x_ref.shape
    x2d = x_ref[...].reshape(Bb * N, C)                                  # bf16

    # Fused q/k/v 1x1 convs (with bias): one (Bb*N, C) x (C, 3C) MXU push,
    # f32 accumulation.
    qkv = jnp.dot(x2d, wqkv_ref[...], preferred_element_type=jnp.float32)
    qkv = qkv + bqkv_ref[...]                                            # (Bb*N, 3C)

    q = qkv[:, :C].reshape(Bb, N, C).astype(jnp.bfloat16)
    k = qkv[:, C:2 * C].reshape(Bb, N, C).astype(jnp.bfloat16)
    v = qkv[:, 2 * C:].reshape(Bb, N, C).astype(jnp.bfloat16)

    # torch: att_map = bmm(q^T, k); att_map = att_map.transpose(1, 2)
    #   => logits[b, i, j] = <k_i, q_j>        shape (Bb, N, N)
    logits = jnp.einsum('bic,bjc->bij', k, q,
                        preferred_element_type=jnp.float32)

    # nn.Softmax(dim=2) over the last axis (numerically stable form);
    # reciprocal goes to the EUP slot instead of a VALU divide.
    m = jnp.max(logits, axis=-1, keepdims=True)
    e = jnp.exp(logits - m)
    inv = pl.reciprocal(jnp.sum(e, axis=-1, keepdims=True), approx=True)
    a = (e * inv).astype(jnp.bfloat16)                                   # (Bb, N, N)

    # torch: att = bmm(v, att_map)  -> channels-last:
    #   att_cl[b, i, c] = sum_j a[b, j, i] * v[b, j, c]
    att_cl = jnp.einsum('bji,bjc->bic', a, v,
                        preferred_element_type=jnp.float32)

    # AdaptiveAvgPool2d((1,1)) + Flatten == mean over the N spatial positions
    # (fold 1/N into a constant scale instead of a divide).
    f_ref[...] = (jnp.sum(att_cl, axis=1) * (1.0 / N)).astype(f_ref.dtype)


def extract_model_head(x_feat, params, *, b_blk=None):
    """x_feat: (B, 512, H, W) float32 feature map (output of self.extract)."""
    B, C, H, W = x_feat.shape
    N = H * W

    # NCHW -> (B, N, C): channels-last / lane-dense; bf16 for the MXU.
    x = jnp.transpose(x_feat.reshape(B, C, N), (0, 2, 1)).astype(jnp.bfloat16)

    # Fused q/k/v weights, pre-transposed to (Cin, 3*Cout), bf16.
    w_qkv = jnp.concatenate(
        [params["wq"].T, params["wk"].T, params["wv"].T], axis=1
    ).astype(jnp.bfloat16)                                               # (C, 3C)
    b_qkv = jnp.concatenate(
        [params["bq"], params["bk"], params["bv"]]
    ).reshape(1, 3 * C).astype(jnp.float32)

    # Batch block: single block if B is small, otherwise a multiple of 8
    # targeting >= ~256 matmul rows (B_BLK * N) so the MXU / sublanes are
    # well occupied, while staying well inside VMEM (v7x: 64 MiB physical).
    if b_blk is None:
        if B <= 8:
            b_blk = B
        else:
            b_blk = min(B, max(8, ((-(-256 // N)) + 7) // 8 * 8), 64)
    nb = -(-B // b_blk)
    B_pad = nb * b_blk
    if B_pad != B:
        x = jnp.pad(x, ((0, B_pad - B), (0, 0), (0, 0)))

    # Explicit VMEM budget (double-buffered blocks + in-kernel temporaries).
    vmem_est = (
        2 * (b_blk * N * C * 2)              # x block (bf16, 2 buffers)
        + 2 * (b_blk * C * 4)                # f block (f32, 2 buffers)
        + 2 * (C * 3 * C * 2 + 3 * C * 4)    # fused weights + bias
        + b_blk * N * (3 * C + 2 * N) * 4    # qkv / logits / softmax temps
    )
    vmem_limit = int(min(48 * 1024 * 1024, max(32 * 1024 * 1024, 2 * vmem_est)))

    flops = B_pad * (2 * N * C * 3 * C + 4 * N * N * C)
    bytes_accessed = (x.size * 2 + w_qkv.size * 2 + b_qkv.size * 4
                      + B_pad * C * 4)

    f = pl.pallas_call(
        _attn_head_kernel,
        out_shape=jax.ShapeDtypeStruct((B_pad, C), jnp.float32),
        grid_spec=pltpu.PrefetchScalarGridSpec(
            num_scalar_prefetch=0,
            grid=(nb,),
            in_specs=[
                pl.BlockSpec((b_blk, N, C), lambda b: (b, 0, 0)),    # x
                pl.BlockSpec((C, 3 * C), lambda b: (0, 0)),          # w_qkv
                pl.BlockSpec((1, 3 * C), lambda b: (0, 0)),          # b_qkv
            ],
            out_specs=pl.BlockSpec((b_blk, C), lambda b: (b, 0)),    # f
        ),
        compiler_params=pltpu.CompilerParams(
            dimension_semantics=("parallel",),      # batch blocks independent
            vmem_limit_bytes=vmem_limit),
        cost_estimate=pl.CostEstimate(
            flops=int(flops),
            transcendentals=int(B_pad * N * N),
            bytes_accessed=int(bytes_accessed)),
    )(x, w_qkv, b_qkv)

    f = f[:B]
    # Final nn.Linear classifier in plain JAX: a (B,512)x(512,n_classes)
    # matmul with a 10-lane output is a poor fit for in-kernel MXU/stores.
    c = f @ params["wo"].T.astype(jnp.float32) + params["bo"]
    return f, c


def init_params(key, c=512, n_classes=10):
    """Deterministic synthetic init (shapes match the torch module).
    Conv weights use a small std (instead of kaiming fan_out) so the
    un-scaled attention logits stay in a numerically friendly range."""
    ks = jax.random.split(key, 8)
    std_conv = 0.01
    std_lin = (2.0 / c) ** 0.5
    return {
        "wq": std_conv * jax.random.normal(ks[0], (c, c), jnp.float32),
        "bq": std_conv * jax.random.normal(ks[1], (c,), jnp.float32),
        "wk": std_conv * jax.random.normal(ks[2], (c, c), jnp.float32),
        "bk": std_conv * jax.random.normal(ks[3], (c,), jnp.float32),
        "wv": std_conv * jax.random.normal(ks[4], (c, c), jnp.float32),
        "bv": std_conv * jax.random.normal(ks[5], (c,), jnp.float32),
        "wo": std_lin * jax.random.normal(ks[6], (n_classes, c), jnp.float32),
        "bo": jnp.zeros((n_classes,), jnp.float32),
    }


def reference(x_feat, p):
    """Pure-JAX mirror of the torch forward (post-extract), for sanity."""
    B, C, H, W = x_feat.shape
    N = H * W
    xf = x_feat.reshape(B, C, N)
    conv = lambda w, b: jnp.einsum("oc,bcn->bon", w, xf) + b[None, :, None]
    q = conv(p["wq"], p["bq"])
    k = conv(p["wk"], p["bk"])
    v = conv(p["wv"], p["bv"])
    qT = jnp.transpose(q, (0, 2, 1))                       # (B, N, C)
    att_map = jnp.einsum("bnc,bcm->bnm", qT, k)            # (B, N, N)
    att_map = jnp.transpose(att_map, (0, 2, 1))
    att_map = jax.nn.softmax(att_map, axis=2)
    att = jnp.einsum("bcn,bnm->bcm", v, att_map)           # (B, C, N)
    f = jnp.mean(att, axis=2)                              # (B, C)
    c = f @ p["wo"].T + p["bo"]
    return f, c


if __name__ == "__main__":
    B, C, H, W, n_classes = 2, 512, 2, 2, 10   # 64x64 image -> 2x2 resnet map
    key = jax.random.PRNGKey(0)
    k_x, k_p = jax.random.split(key)

    # Stand-in for the output of self.extract (ResNet18 trunk): (B, 512, 2, 2).
    x_feat = jax.random.normal(k_x, (B, C, H, W), jnp.float32)
    params = init_params(k_p, C, n_classes)

    f, c = extract_model_head(x_feat, params)
    (f, c) = jax.block_until_ready((f, c))

    f_ref, c_ref = reference(x_feat, params)
    assert f.shape == (B, C) and c.shape == (B, n_classes)
    assert jnp.all(jnp.isfinite(f)) and jnp.all(jnp.isfinite(c))
    assert jnp.allclose(f, f_ref, rtol=5e-2, atol=2e-2)
    assert jnp.allclose(c, c_ref, rtol=5e-2, atol=2e-2)
    print("KERNEL_OK")
</pallas_src>

<mosaic_0001>
module attributes {stable_mosaic.version = 11 : i64} {
  func.func @_attn_head_kernel(%arg0: i32, %arg1: memref<2x4x512xbf16, #tpu.memory_space<vmem>>, %arg2: memref<512x1536xbf16, #tpu.memory_space<vmem>>, %arg3: memref<1x1536xf32, #tpu.memory_space<vmem>>, %arg4: memref<2x512xf32, #tpu.memory_space<vmem>>) attributes {dimension_semantics = [#tpu.dimension_semantics<parallel>], iteration_bounds = array<i64: 1>, scalar_prefetch = 0 : i64, scratch_operands = 0 : i64, tpu.core_type = #tpu.core_type<tc>, window_params = [{transform_indices = @transform_0, window_bounds = array<i64: 2, 4, 512>}, {pipeline_mode = #tpu.pipeline_mode<synchronous>, transform_indices = @transform_1, window_bounds = array<i64: 512, 1536>}, {pipeline_mode = #tpu.pipeline_mode<synchronous>, transform_indices = @transform_2, window_bounds = array<i64: 1, 1536>}, {transform_indices = @transform_3, window_bounds = array<i64: 2, 512>}]} {
    %c0 = arith.constant 0 : index
    %c0_0 = arith.constant 0 : index
    %c0_1 = arith.constant 0 : index
    %0 = vector.load %arg1[%c0, %c0_0, %c0_1] : memref<2x4x512xbf16, #tpu.memory_space<vmem>>, vector<2x4x512xbf16>
    %1 = vector.shape_cast %0 : vector<2x4x512xbf16> to vector<8x512xbf16>
    %c0_2 = arith.constant 0 : index
    %c0_3 = arith.constant 0 : index
    %2 = vector.load %arg2[%c0_2, %c0_3] : memref<512x1536xbf16, #tpu.memory_space<vmem>>, vector<512x1536xbf16>
    %cst = arith.constant dense<0.000000e+00> : vector<8x1536xf32>
    %3 = tpu.matmul %1, %2, %cst {dimension_numbers = #tpu.dot_dimension_numbers<[1], [0], [0], [1], [0, 0, 1, 1], [], []>} : vector<8x512xbf16>, vector<512x1536xbf16>, vector<8x1536xf32> -> vector<8x1536xf32>
    %c0_4 = arith.constant 0 : index
    %c0_5 = arith.constant 0 : index
    %4 = vector.load %arg3[%c0_4, %c0_5] : memref<1x1536xf32, #tpu.memory_space<vmem>>, vector<1x1536xf32>
    %5 = vector.broadcast %4 : vector<1x1536xf32> to vector<8x1536xf32>
    %6 = arith.addf %3, %5 : vector<8x1536xf32>
    %7 = vector.extract_strided_slice %6 {offsets = [0, 0], sizes = [8, 512], strides = [1, 1]} : vector<8x1536xf32> to vector<8x512xf32>
    %8 = vector.shape_cast %7 : vector<8x512xf32> to vector<2x4x512xf32>
    %9 = arith.truncf %8 : vector<2x4x512xf32> to vector<2x4x512xbf16>
    %10 = vector.extract_strided_slice %6 {offsets = [0, 512], sizes = [8, 512], strides = [1, 1]} : vector<8x1536xf32> to vector<8x512xf32>
    %11 = vector.shape_cast %10 : vector<8x512xf32> to vector<2x4x512xf32>
    %12 = arith.truncf %11 : vector<2x4x512xf32> to vector<2x4x512xbf16>
    %13 = vector.extract_strided_slice %6 {offsets = [0, 1024], sizes = [8, 512], strides = [1, 1]} : vector<8x1536xf32> to vector<8x512xf32>
    %14 = vector.shape_cast %13 : vector<8x512xf32> to vector<2x4x512xf32>
    %15 = arith.truncf %14 : vector<2x4x512xf32> to vector<2x4x512xbf16>
    "tpu.trace_start"() <{level = 10 : i32, message = "bic,bjc->bij"}> : () -> ()
    %cst_6 = arith.constant dense<0.000000e+00> : vector<2x4x4xf32>
    %16 = tpu.matmul %12, %9, %cst_6 {dimension_numbers = #tpu.dot_dimension_numbers<[2], [2], [1], [1], [0, 0, 0, 1, 1, 1], [0], [0]>} : vector<2x4x512xbf16>, vector<2x4x512xbf16>, vector<2x4x4xf32> -> vector<2x4x4xf32>
    "tpu.trace_stop"() : () -> ()
    %cst_7 = arith.constant dense<0xFF800000> : vector<2x4xf32>
    %17 = vector.multi_reduction <maximumf>, %16, %cst_7 [2] : vector<2x4x4xf32> to vector<2x4xf32>
    %18 = vector.shape_cast %17 : vector<2x4xf32> to vector<2x4x1xf32>
    %19 = vector.broadcast %18 : vector<2x4x1xf32> to vector<2x4x4xf32>
    %20 = arith.subf %16, %19 : vector<2x4x4xf32>
    %21 = math.exp %20 : vector<2x4x4xf32>
    %cst_8 = arith.constant dense<0.000000e+00> : vector<2x4xf32>
    %22 = vector.multi_reduction <add>, %21, %cst_8 [2] : vector<2x4x4xf32> to vector<2x4xf32>
    %23 = vector.shape_cast %22 : vector<2x4xf32> to vector<2x4x1xf32>
    %24 = tpu.reciprocal %23 {approx = true} : vector<2x4x1xf32> -> vector<2x4x1xf32>
    %25 = vector.broadcast %24 : vector<2x4x1xf32> to vector<2x4x4xf32>
    %26 = arith.mulf %21, %25 : vector<2x4x4xf32>
    %27 = arith.truncf %26 : vector<2x4x4xf32> to vector<2x4x4xbf16>
    "tpu.trace_start"() <{level = 10 : i32, message = "bji,bjc->bic"}> : () -> ()
    %cst_9 = arith.constant dense<0.000000e+00> : vector<2x4x512xf32>
    %28 = tpu.matmul %27, %15, %cst_9 {dimension_numbers = #tpu.dot_dimension_numbers<[1], [1], [2], [2], [0, 0, 0, 2, 1, 2], [0], [0]>} : vector<2x4x4xbf16>, vector<2x4x512xbf16>, vector<2x4x512xf32> -> vector<2x4x512xf32>
    "tpu.trace_stop"() : () -> ()
    %cst_10 = arith.constant dense<0.000000e+00> : vector<2x512xf32>
    %29 = vector.multi_reduction <add>, %28, %cst_10 [1] : vector<2x4x512xf32> to vector<2x512xf32>
    %cst_11 = arith.constant 2.500000e-01 : f32
    %30 = vector.broadcast %cst_11 : f32 to vector<2x512xf32>
    %31 = arith.mulf %29, %30 : vector<2x512xf32>
    %c0_12 = arith.constant 0 : index
    %c0_13 = arith.constant 0 : index
    %32 = vector.load %arg4[%c0_12, %c0_13] : memref<2x512xf32, #tpu.memory_space<vmem>>, vector<2x512xf32>
    tpu.vector_store %arg4[%c0_12, %c0_13], %31 {strides = array<i32>} : memref<2x512xf32, #tpu.memory_space<vmem>>, vector<2x512xf32>,
    return
  }
  func.func @transform_0(%arg0: i32) -> (i32, i32, i32) {
    %c0_i32 = arith.constant 0 : i32
    %c0_i32_0 = arith.constant 0 : i32
    %c0_i32_1 = arith.constant 0 : i32
    return %arg0, %c0_i32, %c0_i32_0 : i32, i32, i32
  }
  func.func @transform_1(%arg0: i32) -> (i32, i32) {
    %c0_i32 = arith.constant 0 : i32
    %c0_i32_0 = arith.constant 0 : i32
    %c0_i32_1 = arith.constant 0 : i32
    return %c0_i32, %c0_i32_0 : i32, i32
  }
  func.func @transform_2(%arg0: i32) -> (i32, i32) {
    %c0_i32 = arith.constant 0 : i32
    %c0_i32_0 = arith.constant 0 : i32
    %c0_i32_1 = arith.constant 0 : i32
    return %c0_i32, %c0_i32_0 : i32, i32
  }
  func.func @transform_3(%arg0: i32) -> (i32, i32) {
    %c0_i32 = arith.constant 0 : i32
    %c0_i32_0 = arith.constant 0 : i32
    return %arg0, %c0_i32 : i32, i32
  }
}

</mosaic_0001>

<llo_original>
// kernel: tpu_custom_call.1
$region0: #{tpu_custom_call.1}
  #allocation0 [shape = 'u32[]', space=smem, size = 0x4, offset = 0x4, fixed_abs, tag = 'smem constant byte address 0x4 - core index']
  #allocation1 [shape = 'u32[144,128]{1,0:T(1,128)}', space=vmem, size = 0x12000, scoped, tag = 'internal scratch']
  %s0 = inlined_call_operand.hbm [shape: bf16[2,4,512], index: 0, kind: input, shape index: {}]
  %s1 = inlined_call_operand.hbm [shape: bf16[512,1536], index: 1, kind: input, shape index: {}]
  %s2 = inlined_call_operand.hbm [shape: f32[1,1536], index: 2, kind: input, shape index: {}]
  %s3 = inlined_call_operand.hbm [shape: f32[2,512], index: 3, kind: output, shape index: {}]
  %s4 = sld [smem:[#allocation0]]
  $region34: #{tpu_custom_call.1} parent=0
    _
  %s6 = ssub.s32 1, %s4
  %s7 = scalar_select 0, %s6, %s4
  $region1: #{tpu_custom_call.1} parent=0
    #allocation2 [shape = 'u8[8192]{0}', space=vmem, size = 0x2000, scoped, tag = 'input window, operand 0, single buffered']
    #allocation3 [shape = 's32[1]{0}', space=sflag, size = 0x4, scoped, tag = 'scoped memory for tpu_custom_call.1']
    #allocation4 [shape = 's32[1]{0}', space=sflag, size = 0x4, scoped, tag = 'scoped memory for tpu_custom_call.1']
    #allocation5 [shape = 'u8[1572864]{0}', space=vmem, size = 0x180000, scoped, tag = 'input window, operand 1, single buffered']
    #allocation6 [shape = 's32[1]{0}', space=sflag, size = 0x4, scoped, tag = 'scoped memory for tpu_custom_call.1']
    #allocation7 [shape = 'u8[6144]{0}', space=vmem, size = 0x1800, scoped, tag = 'input window, operand 2, single buffered']
    #allocation8 [shape = 'u8[4096]{0}', space=vmem, size = 0x1000, scoped, tag = 'output window, operand 0, single buffered']
    %8 = vsyncpa [#allocation3], 0
    %9 = vsyncpa [#allocation6], 0
    %10 = vsyncpa [#allocation4], 0
    // Predicated region
    $region2: #{tpu_custom_call.1} parent=1 // pred_check
      _
    $region3: #{tpu_custom_call.1} parent=1 // pred_check_branch
      %12 = sbr.rel (0) target = $region5
    $region4: #{tpu_custom_call.1} parent=1 // pred_region
      %s14 = ssub.s32 256, 256
      %15 = vsyncadd [#allocation3], %s14
      %s16 = sshll.u32 [#allocation2], 4
      %s17 = int_to_ptr.vmem [resolvable:$true] %s16
      %22 = dma.hbm_to_vmem [thread:$0]  %s0, 256, %s17, [#allocation3], 128, 128, 8
    $region5: #{tpu_custom_call.1} parent=1 // pred_fallthru
      _
    // Predicated region
    $region6: #{tpu_custom_call.1} parent=1 // pred_check
      _
    $region7: #{tpu_custom_call.1} parent=1 // pred_check_branch
      %24 = sbr.rel (0) target = $region9
    $region8: #{tpu_custom_call.1} parent=1 // pred_region
      %s26 = ssub.s32 49152, 49152
      %27 = vsyncadd [#allocation6], %s26
      %s28 = sshll.u32 [#allocation5], 4
      %s29 = int_to_ptr.vmem [resolvable:$true] %s28
      %34 = dma.hbm_to_vmem [thread:$0]  %s1, 49152, %s29, [#allocation6], 768, 768, 48
    $region9: #{tpu_custom_call.1} parent=1 // pred_fallthru
      _
    // Predicated region
    $region10: #{tpu_custom_call.1} parent=1 // pred_check
      _
    $region11: #{tpu_custom_call.1} parent=1 // pred_check_branch
      %36 = sbr.rel (0) target = $region13
    $region12: #{tpu_custom_call.1} parent=1 // pred_region
      %s38 = ssub.s32 192, 192
      %39 = vsyncadd [#allocation6], %s38
      %s41 = sshll.u32 [#allocation7], 4
      %s42 = int_to_ptr.vmem [resolvable:$true] %s41
      %44 = dma.hbm_to_vmem [thread:$0]  %s2, 192, %s42, [#allocation6]
    $region13: #{tpu_custom_call.1} parent=1 // pred_fallthru
      _
    // Predicated region
    $region14: #{tpu_custom_call.1} parent=1 // pred_check
      _
    $region15: #{tpu_custom_call.1} parent=1 // pred_check_branch
      %46 = sbr.rel (0) target = $region17
    $region16: #{tpu_custom_call.1} parent=1 // pred_region
      %47 = dma.done [#allocation3], 256
    $region17: #{tpu_custom_call.1} parent=1 // pred_fallthru
      _
    // Predicated region
    $region18: #{tpu_custom_call.1} parent=1 // pred_check
      _
    $region19: #{tpu_custom_call.1} parent=1 // pred_check_branch
      %49 = sbr.rel (0) target = $region21
    $region20: #{tpu_custom_call.1} parent=1 // pred_region
      %50 = dma.done [#allocation6], 49152
    $region21: #{tpu_custom_call.1} parent=1 // pred_fallthru
      _
    // Predicated region
    $region22: #{tpu_custom_call.1} parent=1 // pred_check
      _
    $region23: #{tpu_custom_call.1} parent=1 // pred_check_branch
      %52 = sbr.rel (0) target = $region25
    $region24: #{tpu_custom_call.1} parent=1 // pred_region
      %53 = dma.done [#allocation6], 192
    $region25: #{tpu_custom_call.1} parent=1 // pred_fallthru
      _
    %v55 = vld [vmem:[#allocation2] sm:$0xff]
    %v56 = vld [vmem:[#allocation2 + $0x8] sm:$0xff]
    %v57 = vld [vmem:[#allocation5] sm:$0xff]
    %v58 = vld [vmem:[#allocation5 + $0x8] sm:$0xff]
    %v59 = vld [vmem:[#allocation5 + $0x10] sm:$0xff]
    %v60 = vld [vmem:[#allocation5 + $0x18] sm:$0xff]
    %v61 = vld [vmem:[#allocation5 + $0x20] sm:$0xff]
    %v62 = vld [vmem:[#allocation5 + $0x28] sm:$0xff]
    %v63 = vld [vmem:[#allocation5 + $0x30] sm:$0xff]
    %v64 = vld [vmem:[#allocation5 + $0x38] sm:$0xff]
    %v65 = vld [vmem:[#allocation5 + $0x40] sm:$0xff]
    %v66 = vld [vmem:[#allocation5 + $0x48] sm:$0xff]
    %v67 = vld [vmem:[#allocation5 + $0x50] sm:$0xff]
    %v68 = vld [vmem:[#allocation5 + $0x58] sm:$0xff]
    %v69 = vld [vmem:[#allocation5 + $0x60] sm:$0xff]
    %v70 = vld [vmem:[#allocation5 + $0x68] sm:$0xff]
    %v71 = vld [vmem:[#allocation5 + $0x70] sm:$0xff]
    %v72 = vld [vmem:[#allocation5 + $0x78] sm:$0xff]
    %v73 = vld [vmem:[#allocation5 + $0x80] sm:$0xff]
    %v74 = vld [vmem:[#allocation5 + $0x88] sm:$0xff]
    %v75 = vld [vmem:[#allocation5 + $0x90] sm:$0xff]
    %v76 = vld [vmem:[#allocation5 + $0x98] sm:$0xff]
    %v77 = vld [vmem:[#allocation5 + $0xa0] sm:$0xff]
    %v78 = vld [vmem:[#allocation5 + $0xa8] sm:$0xff]
    %v79 = vld [vmem:[#allocation5 + $0xb0] sm:$0xff]
    %v80 = vld [vmem:[#allocation5 + $0xb8] sm:$0xff]
    %v81 = vld [vmem:[#allocation5 + $0xc0] sm:$0xff]
    %v82 = vld [vmem:[#allocation5 + $0xc8] sm:$0xff]
    %v83 = vld [vmem:[#allocation5 + $0xd0] sm:$0xff]
    %v84 = vld [vmem:[#allocation5 + $0xd8] sm:$0xff]
    %v85 = vld [vmem:[#allocation5 + $0xe0] sm:$0xff]
    %v86 = vld [vmem:[#allocation5 + $0xe8] sm:$0xff]
    %v87 = vld [vmem:[#allocation5 + $0xf0] sm:$0xff]
    %v88 = vld [vmem:[#allocation5 + $0xf8] sm:$0xff]
    %v89 = vld [vmem:[#allocation5 + $0x100] sm:$0xff]
    %v90 = vld [vmem:[#allocation5 + $0x108] sm:$0xff]
    %v91 = vld [vmem:[#allocation5 + $0x110] sm:$0xff]
    %v92 = vld [vmem:[#allocation5 + $0x118] sm:$0xff]
    %v93 = vld [vmem:[#allocation5 + $0x120] sm:$0xff]
    %v94 = vld [vmem:[#allocation5 + $0x128] sm:$0xff]
    %v95 = vld [vmem:[#allocation5 + $0x130] sm:$0xff]
    %v96 = vld [vmem:[#allocation5 + $0x138] sm:$0xff]
    %v97 = vld [vmem:[#allocation5 + $0x140] sm:$0xff]
    %v98 = vld [vmem:[#allocation5 + $0x148] sm:$0xff]
    %v99 = vld [vmem:[#allocation5 + $0x150] sm:$0xff]
    %v100 = vld [vmem:[#allocation5 + $0x158] sm:$0xff]
    %v101 = vld [vmem:[#allocation5 + $0x160] sm:$0xff]
    %v102 = vld [vmem:[#allocation5 + $0x168] sm:$0xff]
    %v103 = vld [vmem:[#allocation5 + $0x170] sm:$0xff]
    %v104 = vld [vmem:[#allocation5 + $0x178] sm:$0xff]
    %v105 = vld [vmem:[#allocation5 + $0x180] sm:$0xff]
    %v106 = vld [vmem:[#allocation5 + $0x188] sm:$0xff]
    %v107 = vld [vmem:[#allocation5 + $0x190] sm:$0xff]
    %v108 = vld [vmem:[#allocation5 + $0x198] sm:$0xff]
    %v109 = vld [vmem:[#allocation5 + $0x1a0] sm:$0xff]
    %v110 = vld [vmem:[#allocation5 + $0x1a8] sm:$0xff]
    %v111 = vld [vmem:[#allocation5 + $0x1b0] sm:$0xff]
    %v112 = vld [vmem:[#allocation5 + $0x1b8] sm:$0xff]
    %v113 = vld [vmem:[#allocation5 + $0x1c0] sm:$0xff]
    %v114 = vld [vmem:[#allocation5 + $0x1c8] sm:$0xff]
    %v115 = vld [vmem:[#allocation5 + $0x1d0] sm:$0xff]
    %v116 = vld [vmem:[#allocation5 + $0x1d8] sm:$0xff]
    %v117 = vld [vmem:[#allocation5 + $0x1e0] sm:$0xff]
    %v118 = vld [vmem:[#allocation5 + $0x1e8] sm:$0xff]
    %v119 = vld [vmem:[#allocation5 + $0x1f0] sm:$0xff]
    %v120 = vld [vmem:[#allocation5 + $0x1f8] sm:$0xff]
    %v121 = vld [vmem:[#allocation5 + $0x200] sm:$0xff]
    %v122 = vld [vmem:[#allocation5 + $0x208] sm:$0xff]
    %v123 = vld [vmem:[#allocation5 + $0x210] sm:$0xff]
    %v124 = vld [vmem:[#allocation5 + $0x218] sm:$0xff]
    %v125 = vld [vmem:[#allocation5 + $0x220] sm:$0xff]
    %v126 = vld [vmem:[#allocation5 + $0x228] sm:$0xff]
    %v127 = vld [vmem:[#allocation5 + $0x230] sm:$0xff]
    %v128 = vld [vmem:[#allocation5 + $0x238] sm:$0xff]
    %v129 = vld [vmem:[#allocation5 + $0x240] sm:$0xff]
    %v130 = vld [vmem:[#allocation5 + $0x248] sm:$0xff]
    %v131 = vld [vmem:[#allocation5 + $0x250] sm:$0xff]
    %v132 = vld [vmem:[#allocation5 + $0x258] sm:$0xff]
    %v133 = vld [vmem:[#allocation5 + $0x260] sm:$0xff]
    %v134 = vld [vmem:[#allocation5 + $0x268] sm:$0xff]
    %v135 = vld [vmem:[#allocation5 + $0x270] sm:$0xff]
    %v136 = vld [vmem:[#allocation5 + $0x278] sm:$0xff]
    %v137 = vld [vmem:[#allocation5 + $0x280] sm:$0xff]
    %v138 = vld [vmem:[#allocation5 + $0x288] sm:$0xff]
    %v139 = vld [vmem:[#allocation5 + $0x290] sm:$0xff]
    %v140 = vld [vmem:[#allocation5 + $0x298] sm:$0xff]
    %v141 = vld [vmem:[#allocation5 + $0x2a0] sm:$0xff]
    %v142 = vld [vmem:[#allocation5 + $0x2a8] sm:$0xff]
    %v143 = vld [vmem:[#allocation5 + $0x2b0] sm:$0xff]
    %v144 = vld [vmem:[#allocation5 + $0x2b8] sm:$0xff]
    %v145 = vld [vmem:[#allocation5 + $0x2c0] sm:$0xff]
    %v146 = vld [vmem:[#allocation5 + $0x2c8] sm:$0xff]
    %v147 = vld [vmem:[#allocation5 + $0x2d0] sm:$0xff]
    %v148 = vld [vmem:[#allocation5 + $0x2d8] sm:$0xff]
    %v149 = vld [vmem:[#allocation5 + $0x2e0] sm:$0xff]
    %v150 = vld [vmem:[#allocation5 + $0x2e8] sm:$0xff]
    %v151 = vld [vmem:[#allocation5 + $0x2f0] sm:$0xff]
    %v152 = vld [vmem:[#allocation5 + $0x2f8] sm:$0xff]
    %v153 = vld [vmem:[#allocation5 + $0x300] sm:$0xff]
    %v154 = vld [vmem:[#allocation5 + $0x308] sm:$0xff]
    %v155 = vld [vmem:[#allocation5 + $0x310] sm:$0xff]
    %v156 = vld [vmem:[#allocation5 + $0x318] sm:$0xff]
    %v157 = vld [vmem:[#allocation5 + $0x320] sm:$0xff]
    %v158 = vld [vmem:[#allocation5 + $0x328] sm:$0xff]
    %v159 = vld [vmem:[#allocation5 + $0x330] sm:$0xff]
    %v160 = vld [vmem:[#allocation5 + $0x338] sm:$0xff]
    %v161 = vld [vmem:[#allocation5 + $0x340] sm:$0xff]
    %v162 = vld [vmem:[#allocation5 + $0x348] sm:$0xff]
    %v163 = vld [vmem:[#allocation5 + $0x350] sm:$0xff]
    %v164 = vld [vmem:[#allocation5 + $0x358] sm:$0xff]
    %v165 = vld [vmem:[#allocation5 + $0x360] sm:$0xff]
    %v166 = vld [vmem:[#allocation5 + $0x368] sm:$0xff]
    %v167 = vld [vmem:[#allocation5 + $0x370] sm:$0xff]
    %v168 = vld [vmem:[#allocation5 + $0x378] sm:$0xff]
    %v169 = vld [vmem:[#allocation5 + $0x380] sm:$0xff]
    %v170 = vld [vmem:[#allocation5 + $0x388] sm:$0xff]
    %v171 = vld [vmem:[#allocation5 + $0x390] sm:$0xff]
    %v172 = vld [vmem:[#allocation5 + $0x398] sm:$0xff]
    %v173 = vld [vmem:[#allocation5 + $0x3a0] sm:$0xff]
    %v174 = vld [vmem:[#allocation5 + $0x3a8] sm:$0xff]
    %v175 = vld [vmem:[#allocation5 + $0x3b0] sm:$0xff]
    %v176 = vld [vmem:[#allocation5 + $0x3b8] sm:$0xff]
    %v177 = vld [vmem:[#allocation5 + $0x3c0] sm:$0xff]
    %v178 = vld [vmem:[#allocation5 + $0x3c8] sm:$0xff]
    %v179 = vld [vmem:[#allocation5 + $0x3d0] sm:$0xff]
    %v180 = vld [vmem:[#allocation5 + $0x3d8] sm:$0xff]
    %v181 = vld [vmem:[#allocation5 + $0x3e0] sm:$0xff]
    %v182 = vld [vmem:[#allocation5 + $0x3e8] sm:$0xff]
    %v183 = vld [vmem:[#allocation5 + $0x3f0] sm:$0xff]
    %v184 = vld [vmem:[#allocation5 + $0x3f8] sm:$0xff]
    %v185 = vld [vmem:[#allocation5 + $0x400] sm:$0xff]
    %v186 = vld [vmem:[#allocation5 + $0x408] sm:$0xff]
    %v187 = vld [vmem:[#allocation5 + $0x410] sm:$0xff]
    %v188 = vld [vmem:[#allocation5 + $0x418] sm:$0xff]
    %v189 = vld [vmem:[#allocation5 + $0x420] sm:$0xff]
    %v190 = vld [vmem:[#allocation5 + $0x428] sm:$0xff]
    %v191 = vld [vmem:[#allocation5 + $0x430] sm:$0xff]
    %v192 = vld [vmem:[#allocation5 + $0x438] sm:$0xff]
    %v193 = vld [vmem:[#allocation5 + $0x440] sm:$0xff]
    %v194 = vld [vmem:[#allocation5 + $0x448] sm:$0xff]
    %v195 = vld [vmem:[#allocation5 + $0x450] sm:$0xff]
    %v196 = vld [vmem:[#allocation5 + $0x458] sm:$0xff]
    %v197 = vld [vmem:[#allocation5 + $0x460] sm:$0xff]
    %v198 = vld [vmem:[#allocation5 + $0x468] sm:$0xff]
    %v199 = vld [vmem:[#allocation5 + $0x470] sm:$0xff]
    %v200 = vld [vmem:[#allocation5 + $0x478] sm:$0xff]
    %v201 = vld [vmem:[#allocation5 + $0x480] sm:$0xff]
    %v202 = vld [vmem:[#allocation5 + $0x488] sm:$0xff]
    %v203 = vld [vmem:[#allocation5 + $0x490] sm:$0xff]
    %v204 = vld [vmem:[#allocation5 + $0x498] sm:$0xff]
    %v205 = vld [vmem:[#allocation5 + $0x4a0] sm:$0xff]
    %v206 = vld [vmem:[#allocation5 + $0x4a8] sm:$0xff]
    %v207 = vld [vmem:[#allocation5 + $0x4b0] sm:$0xff]
    %v208 = vld [vmem:[#allocation5 + $0x4b8] sm:$0xff]
    %v209 = vld [vmem:[#allocation5 + $0x4c0] sm:$0xff]
    %v210 = vld [vmem:[#allocation5 + $0x4c8] sm:$0xff]
    %v211 = vld [vmem:[#allocation5 + $0x4d0] sm:$0xff]
    %v212 = vld [vmem:[#allocation5 + $0x4d8] sm:$0xff]
    %v213 = vld [vmem:[#allocation5 + $0x4e0] sm:$0xff]
    %v214 = vld [vmem:[#allocation5 + $0x4e8] sm:$0xff]
    %v215 = vld [vmem:[#allocation5 + $0x4f0] sm:$0xff]
    %v216 = vld [vmem:[#allocation5 + $0x4f8] sm:$0xff]
    %v217 = vld [vmem:[#allocation5 + $0x500] sm:$0xff]
    %v218 = vld [vmem:[#allocation5 + $0x508] sm:$0xff]
    %v219 = vld [vmem:[#allocation5 + $0x510] sm:$0xff]
    %v220 = vld [vmem:[#allocation5 + $0x518] sm:$0xff]
    %v221 = vld [vmem:[#allocation5 + $0x520] sm:$0xff]
    %v222 = vld [vmem:[#allocation5 + $0x528] sm:$0xff]
    %v223 = vld [vmem:[#allocation5 + $0x530] sm:$0xff]
    %v224 = vld [vmem:[#allocation5 + $0x538] sm:$0xff]
    %v225 = vld [vmem:[#allocation5 + $0x540] sm:$0xff]
    %v226 = vld [vmem:[#allocation5 + $0x548] sm:$0xff]
    %v227 = vld [vmem:[#allocation5 + $0x550] sm:$0xff]
    %v228 = vld [vmem:[#allocation5 + $0x558] sm:$0xff]
    %v229 = vld [vmem:[#allocation5 + $0x560] sm:$0xff]
    %v230 = vld [vmem:[#allocation5 + $0x568] sm:$0xff]
    %v231 = vld [vmem:[#allocation5 + $0x570] sm:$0xff]
    %v232 = vld [vmem:[#allocation5 + $0x578] sm:$0xff]
    %v233 = vld [vmem:[#allocation5 + $0x580] sm:$0xff]
    %v234 = vld [vmem:[#allocation5 + $0x588] sm:$0xff]
    %v235 = vld [vmem:[#allocation5 + $0x590] sm:$0xff]
    %v236 = vld [vmem:[#allocation5 + $0x598] sm:$0xff]
    %v237 = vld [vmem:[#allocation5 + $0x5a0] sm:$0xff]
    %v238 = vld [vmem:[#allocation5 + $0x5a8] sm:$0xff]
    %v239 = vld [vmem:[#allocation5 + $0x5b0] sm:$0xff]
    %v240 = vld [vmem:[#allocation5 + $0x5b8] sm:$0xff]
    %v241 = vld [vmem:[#allocation5 + $0x5c0] sm:$0xff]
    %v242 = vld [vmem:[#allocation5 + $0x5c8] sm:$0xff]
    %v243 = vld [vmem:[#allocation5 + $0x5d0] sm:$0xff]
    %v244 = vld [vmem:[#allocation5 + $0x5d8] sm:$0xff]
    %v245 = vld [vmem:[#allocation5 + $0x5e0] sm:$0xff]
    %v246 = vld [vmem:[#allocation5 + $0x5e8] sm:$0xff]
    %v247 = vld [vmem:[#allocation5 + $0x5f0] sm:$0xff]
    %v248 = vld [vmem:[#allocation5 + $0x5f8] sm:$0xff]
    %v249 = vld [vmem:[#allocation5 + $0x600] sm:$0xff]
    %v250 = vld [vmem:[#allocation5 + $0x608] sm:$0xff]
    %v251 = vld [vmem:[#allocation5 + $0x610] sm:$0xff]
    %v252 = vld [vmem:[#allocation5 + $0x618] sm:$0xff]
    %v253 = vld [vmem:[#allocation5 + $0x620] sm:$0xff]
    %v254 = vld [vmem:[#allocation5 + $0x628] sm:$0xff]
    %v255 = vld [vmem:[#allocation5 + $0x630] sm:$0xff]
    %v256 = vld [vmem:[#allocation5 + $0x638] sm:$0xff]
    %v257 = vld [vmem:[#allocation5 + $0x640] sm:$0xff]
    %v258 = vld [vmem:[#allocation5 + $0x648] sm:$0xff]
    %v259 = vld [vmem:[#allocation5 + $0x650] sm:$0xff]
    %v260 = vld [vmem:[#allocation5 + $0x658] sm:$0xff]
    %v261 = vld [vmem:[#allocation5 + $0x660] sm:$0xff]
    %v262 = vld [vmem:[#allocation5 + $0x668] sm:$0xff]
    %v263 = vld [vmem:[#allocation5 + $0x670] sm:$0xff]
    %v264 = vld [vmem:[#allocation5 + $0x678] sm:$0xff]
    %v265 = vld [vmem:[#allocation5 + $0x680] sm:$0xff]
    %v266 = vld [vmem:[#allocation5 + $0x688] sm:$0xff]
    %v267 = vld [vmem:[#allocation5 + $0x690] sm:$0xff]
    %v268 = vld [vmem:[#allocation5 + $0x698] sm:$0xff]
    %v269 = vld [vmem:[#allocation5 + $0x6a0] sm:$0xff]
    %v270 = vld [vmem:[#allocation5 + $0x6a8] sm:$0xff]
    %v271 = vld [vmem:[#allocation5 + $0x6b0] sm:$0xff]
    %v272 = vld [vmem:[#allocation5 + $0x6b8] sm:$0xff]
    %v273 = vld [vmem:[#allocation5 + $0x6c0] sm:$0xff]
    %v274 = vld [vmem:[#allocation5 + $0x6c8] sm:$0xff]
    %v275 = vld [vmem:[#allocation5 + $0x6d0] sm:$0xff]
    %v276 = vld [vmem:[#allocation5 + $0x6d8] sm:$0xff]
    %v277 = vld [vmem:[#allocation5 + $0x6e0] sm:$0xff]
    %v278 = vld [vmem:[#allocation5 + $0x6e8] sm:$0xff]
    %v279 = vld [vmem:[#allocation5 + $0x6f0] sm:$0xff]
    %v280 = vld [vmem:[#allocation5 + $0x6f8] sm:$0xff]
    %v281 = vld [vmem:[#allocation5 + $0x700] sm:$0xff]
    %v282 = vld [vmem:[#allocation5 + $0x708] sm:$0xff]
    %v283 = vld [vmem:[#allocation5 + $0x710] sm:$0xff]
    %v284 = vld [vmem:[#allocation5 + $0x718] sm:$0xff]
    %v285 = vld [vmem:[#allocation5 + $0x720] sm:$0xff]
    %v286 = vld [vmem:[#allocation5 + $0x728] sm:$0xff]
    %v287 = vld [vmem:[#allocation5 + $0x730] sm:$0xff]
    %v288 = vld [vmem:[#allocation5 + $0x738] sm:$0xff]
    %v289 = vld [vmem:[#allocation5 + $0x740] sm:$0xff]
    %v290 = vld [vmem:[#allocation5 + $0x748] sm:$0xff]
    %v291 = vld [vmem:[#allocation5 + $0x750] sm:$0xff]
    %v292 = vld [vmem:[#allocation5 + $0x758] sm:$0xff]
    %v293 = vld [vmem:[#allocation5 + $0x760] sm:$0xff]
    %v294 = vld [vmem:[#allocation5 + $0x768] sm:$0xff]
    %v295 = vld [vmem:[#allocation5 + $0x770] sm:$0xff]
    %v296 = vld [vmem:[#allocation5 + $0x778] sm:$0xff]
    %v297 = vld [vmem:[#allocation5 + $0x780] sm:$0xff]
    %v298 = vld [vmem:[#allocation5 + $0x788] sm:$0xff]
    %v299 = vld [vmem:[#allocation5 + $0x790] sm:$0xff]
    %v300 = vld [vmem:[#allocation5 + $0x798] sm:$0xff]
    %v301 = vld [vmem:[#allocation5 + $0x7a0] sm:$0xff]
    %v302 = vld [vmem:[#allocation5 + $0x7a8] sm:$0xff]
    %v303 = vld [vmem:[#allocation5 + $0x7b0] sm:$0xff]
    %v304 = vld [vmem:[#allocation5 + $0x7b8] sm:$0xff]
    %v305 = vld [vmem:[#allocation5 + $0x7c0] sm:$0xff]
    %v306 = vld [vmem:[#allocation5 + $0x7c8] sm:$0xff]
    %v307 = vld [vmem:[#allocation5 + $0x7d0] sm:$0xff]
    %v308 = vld [vmem:[#allocation5 + $0x7d8] sm:$0xff]
    %v309 = vld [vmem:[#allocation5 + $0x7e0] sm:$0xff]
    %v310 = vld [vmem:[#allocation5 + $0x7e8] sm:$0xff]
    %v311 = vld [vmem:[#allocation5 + $0x7f0] sm:$0xff]
    %v312 = vld [vmem:[#allocation5 + $0x7f8] sm:$0xff]
    %v313 = vld [vmem:[#allocation5 + $0x800] sm:$0xff]
    %v314 = vld [vmem:[#allocation5 + $0x808] sm:$0xff]
    %v315 = vld [vmem:[#allocation5 + $0x810] sm:$0xff]
    %v316 = vld [vmem:[#allocation5 + $0x818] sm:$0xff]
    %v317 = vld [vmem:[#allocation5 + $0x820] sm:$0xff]
    %v318 = vld [vmem:[#allocation5 + $0x828] sm:$0xff]
    %v319 = vld [vmem:[#allocation5 + $0x830] sm:$0xff]
    %v320 = vld [vmem:[#allocation5 + $0x838] sm:$0xff]
    %v321 = vld [vmem:[#allocation5 + $0x840] sm:$0xff]
    %v322 = vld [vmem:[#allocation5 + $0x848] sm:$0xff]
    %v323 = vld [vmem:[#allocation5 + $0x850] sm:$0xff]
    %v324 = vld [vmem:[#allocation5 + $0x858] sm:$0xff]
    %v325 = vld [vmem:[#allocation5 + $0x860] sm:$0xff]
    %v326 = vld [vmem:[#allocation5 + $0x868] sm:$0xff]
    %v327 = vld [vmem:[#allocation5 + $0x870] sm:$0xff]
    %v328 = vld [vmem:[#allocation5 + $0x878] sm:$0xff]
    %v329 = vld [vmem:[#allocation5 + $0x880] sm:$0xff]
    %v330 = vld [vmem:[#allocation5 + $0x888] sm:$0xff]
    %v331 = vld [vmem:[#allocation5 + $0x890] sm:$0xff]
    %v332 = vld [vmem:[#allocation5 + $0x898] sm:$0xff]
    %v333 = vld [vmem:[#allocation5 + $0x8a0] sm:$0xff]
    %v334 = vld [vmem:[#allocation5 + $0x8a8] sm:$0xff]
    %v335 = vld [vmem:[#allocation5 + $0x8b0] sm:$0xff]
    %v336 = vld [vmem:[#allocation5 + $0x8b8] sm:$0xff]
    %v337 = vld [vmem:[#allocation5 + $0x8c0] sm:$0xff]
    %v338 = vld [vmem:[#allocation5 + $0x8c8] sm:$0xff]
    %v339 = vld [vmem:[#allocation5 + $0x8d0] sm:$0xff]
    %v340 = vld [vmem:[#allocation5 + $0x8d8] sm:$0xff]
    %v341 = vld [vmem:[#allocation5 + $0x8e0] sm:$0xff]
    %v342 = vld [vmem:[#allocation5 + $0x8e8] sm:$0xff]
    %v343 = vld [vmem:[#allocation5 + $0x8f0] sm:$0xff]
    %v344 = vld [vmem:[#allocation5 + $0x8f8] sm:$0xff]
    %v345 = vld [vmem:[#allocation5 + $0x900] sm:$0xff]
    %v346 = vld [vmem:[#allocation5 + $0x908] sm:$0xff]
    %v347 = vld [vmem:[#allocation5 + $0x910] sm:$0xff]
    %v348 = vld [vmem:[#allocation5 + $0x918] sm:$0xff]
    %v349 = vld [vmem:[#allocation5 + $0x920] sm:$0xff]
    %v350 = vld [vmem:[#allocation5 + $0x928] sm:$0xff]
    %v351 = vld [vmem:[#allocation5 + $0x930] sm:$0xff]
    %v352 = vld [vmem:[#allocation5 + $0x938] sm:$0xff]
    %v353 = vld [vmem:[#allocation5 + $0x940] sm:$0xff]
    %v354 = vld [vmem:[#allocation5 + $0x948] sm:$0xff]
    %v355 = vld [vmem:[#allocation5 + $0x950] sm:$0xff]
    %v356 = vld [vmem:[#allocation5 + $0x958] sm:$0xff]
    %v357 = vld [vmem:[#allocation5 + $0x960] sm:$0xff]
    %v358 = vld [vmem:[#allocation5 + $0x968] sm:$0xff]
    %v359 = vld [vmem:[#allocation5 + $0x970] sm:$0xff]
    %v360 = vld [vmem:[#allocation5 + $0x978] sm:$0xff]
    %v361 = vld [vmem:[#allocation5 + $0x980] sm:$0xff]
    %v362 = vld [vmem:[#allocation5 + $0x988] sm:$0xff]
    %v363 = vld [vmem:[#allocation5 + $0x990] sm:$0xff]
    %v364 = vld [vmem:[#allocation5 + $0x998] sm:$0xff]
    %v365 = vld [vmem:[#allocation5 + $0x9a0] sm:$0xff]
    %v366 = vld [vmem:[#allocation5 + $0x9a8] sm:$0xff]
    %v367 = vld [vmem:[#allocation5 + $0x9b0] sm:$0xff]
    %v368 = vld [vmem:[#allocation5 + $0x9b8] sm:$0xff]
    %v369 = vld [vmem:[#allocation5 + $0x9c0] sm:$0xff]
    %v370 = vld [vmem:[#allocation5 + $0x9c8] sm:$0xff]
    %v371 = vld [vmem:[#allocation5 + $0x9d0] sm:$0xff]
    %v372 = vld [vmem:[#allocation5 + $0x9d8] sm:$0xff]
    %v373 = vld [vmem:[#allocation5 + $0x9e0] sm:$0xff]
    %v374 = vld [vmem:[#allocation5 + $0x9e8] sm:$0xff]
    %v375 = vld [vmem:[#allocation5 + $0x9f0] sm:$0xff]
    %v376 = vld [vmem:[#allocation5 + $0x9f8] sm:$0xff]
    %v377 = vld [vmem:[#allocation5 + $0xa00] sm:$0xff]
    %v378 = vld [vmem:[#allocation5 + $0xa08] sm:$0xff]
    %v379 = vld [vmem:[#allocation5 + $0xa10] sm:$0xff]
    %v380 = vld [vmem:[#allocation5 + $0xa18] sm:$0xff]
    %v381 = vld [vmem:[#allocation5 + $0xa20] sm:$0xff]
    %v382 = vld [vmem:[#allocation5 + $0xa28] sm:$0xff]
    %v383 = vld [vmem:[#allocation5 + $0xa30] sm:$0xff]
    %v384 = vld [vmem:[#allocation5 + $0xa38] sm:$0xff]
    %v385 = vld [vmem:[#allocation5 + $0xa40] sm:$0xff]
    %v386 = vld [vmem:[#allocation5 + $0xa48] sm:$0xff]
    %v387 = vld [vmem:[#allocation5 + $0xa50] sm:$0xff]
    %v388 = vld [vmem:[#allocation5 + $0xa58] sm:$0xff]
    %v389 = vld [vmem:[#allocation5 + $0xa60] sm:$0xff]
    %v390 = vld [vmem:[#allocation5 + $0xa68] sm:$0xff]
    %v391 = vld [vmem:[#allocation5 + $0xa70] sm:$0xff]
    %v392 = vld [vmem:[#allocation5 + $0xa78] sm:$0xff]
    %v393 = vld [vmem:[#allocation5 + $0xa80] sm:$0xff]
    %v394 = vld [vmem:[#allocation5 + $0xa88] sm:$0xff]
    %v395 = vld [vmem:[#allocation5 + $0xa90] sm:$0xff]
    %v396 = vld [vmem:[#allocation5 + $0xa98] sm:$0xff]
    %v397 = vld [vmem:[#allocation5 + $0xaa0] sm:$0xff]
    %v398 = vld [vmem:[#allocation5 + $0xaa8] sm:$0xff]
    %v399 = vld [vmem:[#allocation5 + $0xab0] sm:$0xff]
    %v400 = vld [vmem:[#allocation5 + $0xab8] sm:$0xff]
    %v401 = vld [vmem:[#allocation5 + $0xac0] sm:$0xff]
    %v402 = vld [vmem:[#allocation5 + $0xac8] sm:$0xff]
    %v403 = vld [vmem:[#allocation5 + $0xad0] sm:$0xff]
    %v404 = vld [vmem:[#allocation5 + $0xad8] sm:$0xff]
    %v405 = vld [vmem:[#allocation5 + $0xae0] sm:$0xff]
    %v406 = vld [vmem:[#allocation5 + $0xae8] sm:$0xff]
    %v407 = vld [vmem:[#allocation5 + $0xaf0] sm:$0xff]
    %v408 = vld [vmem:[#allocation5 + $0xaf8] sm:$0xff]
    %v409 = vld [vmem:[#allocation5 + $0xb00] sm:$0xff]
    %v410 = vld [vmem:[#allocation5 + $0xb08] sm:$0xff]
    %v411 = vld [vmem:[#allocation5 + $0xb10] sm:$0xff]
    %v412 = vld [vmem:[#allocation5 + $0xb18] sm:$0xff]
    %v413 = vld [vmem:[#allocation5 + $0xb20] sm:$0xff]
    %v414 = vld [vmem:[#allocation5 + $0xb28] sm:$0xff]
    %v415 = vld [vmem:[#allocation5 + $0xb30] sm:$0xff]
    %v416 = vld [vmem:[#allocation5 + $0xb38] sm:$0xff]
    %v417 = vld [vmem:[#allocation5 + $0xb40] sm:$0xff]
    %v418 = vld [vmem:[#allocation5 + $0xb48] sm:$0xff]
    %v419 = vld [vmem:[#allocation5 + $0xb50] sm:$0xff]
    %v420 = vld [vmem:[#allocation5 + $0xb58] sm:$0xff]
    %v421 = vld [vmem:[#allocation5 + $0xb60] sm:$0xff]
    %v422 = vld [vmem:[#allocation5 + $0xb68] sm:$0xff]
    %v423 = vld [vmem:[#allocation5 + $0xb70] sm:$0xff]
    %v424 = vld [vmem:[#allocation5 + $0xb78] sm:$0xff]
    %v425 = vld [vmem:[#allocation5 + $0xb80] sm:$0xff]
    %v426 = vld [vmem:[#allocation5 + $0xb88] sm:$0xff]
    %v427 = vld [vmem:[#allocation5 + $0xb90] sm:$0xff]
    %v428 = vld [vmem:[#allocation5 + $0xb98] sm:$0xff]
    %v429 = vld [vmem:[#allocation5 + $0xba0] sm:$0xff]
    %v430 = vld [vmem:[#allocation5 + $0xba8] sm:$0xff]
    %v431 = vld [vmem:[#allocation5 + $0xbb0] sm:$0xff]
    %v432 = vld [vmem:[#allocation5 + $0xbb8] sm:$0xff]
    %v433 = vld [vmem:[#allocation5 + $0xbc0] sm:$0xff]
    %v434 = vld [vmem:[#allocation5 + $0xbc8] sm:$0xff]
    %v435 = vld [vmem:[#allocation5 + $0xbd0] sm:$0xff]
    %v436 = vld [vmem:[#allocation5 + $0xbd8] sm:$0xff]
    %v437 = vld [vmem:[#allocation5 + $0xbe0] sm:$0xff]
    %v438 = vld [vmem:[#allocation5 + $0xbe8] sm:$0xff]
    %v439 = vld [vmem:[#allocation5 + $0xbf0] sm:$0xff]
    %v440 = vld [vmem:[#allocation5 + $0xbf8] sm:$0xff]
    %v441 = vld [vmem:[#allocation7] sm:$0xff]
    %v442 = vld [vmem:[#allocation7 + $0x8] sm:$0xf]
    %v445 = vlaneseq
    %v446 = vshrl.u32 %v445, 7
    %v447 = vsub.s32 0, %v446
    %v448 = vrot.slane %v441, %v447
    %v449 = vlaneseq
    %v450 = vshrl.u32 %v449, 7
    %v451 = vsub.s32 1, %v450
    %v452 = vrot.slane %v441, %v451
    %v453 = vlaneseq
    %v454 = vshrl.u32 %v453, 7
    %v455 = vsub.s32 2, %v454
    %v456 = vrot.slane %v441, %v455
    %v457 = vlaneseq
    %v458 = vshrl.u32 %v457, 7
    %v459 = vsub.s32 3, %v458
    %v460 = vrot.slane %v441, %v459
    %v461 = vlaneseq
    %v462 = vshrl.u32 %v461, 7
    %v463 = vsub.s32 4, %v462
    %v464 = vrot.slane %v441, %v463
    %v465 = vlaneseq
    %v466 = vshrl.u32 %v465, 7
    %v467 = vsub.s32 5, %v466
    %v468 = vrot.slane %v441, %v467
    %v469 = vlaneseq
    %v470 = vshrl.u32 %v469, 7
    %v471 = vsub.s32 6, %v470
    %v472 = vrot.slane %v441, %v471
    %v473 = vlaneseq
    %v474 = vshrl.u32 %v473, 7
    %v475 = vsub.s32 7, %v474
    %v476 = vrot.slane %v441, %v475
    %v477 = vlaneseq
    %v478 = vshrl.u32 %v477, 7
    %v479 = vsub.s32 0, %v478
    %v480 = vrot.slane %v442, %v479
    %v481 = vlaneseq
    %v482 = vshrl.u32 %v481, 7
    %v483 = vsub.s32 1, %v482
    %v484 = vrot.slane %v442, %v483
    %v485 = vlaneseq
    %v486 = vshrl.u32 %v485, 7
    %v487 = vsub.s32 2, %v486
    %v488 = vrot.slane %v442, %v487
    %v489 = vlaneseq
    %v490 = vshrl.u32 %v489, 7
    %v491 = vsub.s32 3, %v490
    %v492 = vrot.slane %v442, %v491
    %v507 = vcombine.low %v55, %v56
    %v508 = vcombine.high %v55, %v56
    %v510 = vunpack.c.l.s4 1983009808
    %v511 = vunpack.c.0.s8 %v510
    %v512 = vlaneseq
    %v513 = vshrl.u32 %v512, 7
    %v514 = vsub.s32 %v511, %v513
    %v515 = vrot.slane %v507, %v514
    %v517 = vunpack.c.l.s4 1983009808
    %v518 = vunpack.c.0.s8 %v517
    %v519 = vlaneseq
    %v520 = vshrl.u32 %v519, 7
    %v521 = vsub.s32 %v518, %v520
    %v522 = vrot.slane %v508, %v521
    %v523 = vcombine.high %v515, %v515
    %v524 = vcombine.high %v522, %v522
    %v913 = vunpack.c.l.b16 %v57
    %v914 = vunpack.c.h.b16 %v57
    %v915 = vunpack.c.l.b16 %v58
    %v916 = vunpack.c.h.b16 %v58
    %v917 = vunpack.c.l.b16 %v59
    %v918 = vunpack.c.h.b16 %v59
    %v919 = vunpack.c.l.b16 %v60
    %v920 = vunpack.c.h.b16 %v60
    %v921 = vunpack.c.l.b16 %v61
    %v922 = vunpack.c.h.b16 %v61
    %v923 = vunpack.c.l.b16 %v62
    %v924 = vunpack.c.h.b16 %v62
    %v925 = vunpack.c.l.b16 %v63
    %v926 = vunpack.c.h.b16 %v63
    %v927 = vunpack.c.l.b16 %v64
    %v928 = vunpack.c.h.b16 %v64
    %v929 = vunpack.c.l.b16 %v65
    %v930 = vunpack.c.h.b16 %v65
    %v931 = vunpack.c.l.b16 %v66
    %v932 = vunpack.c.h.b16 %v66
    %v933 = vunpack.c.l.b16 %v67
    %v934 = vunpack.c.h.b16 %v67
    %v935 = vunpack.c.l.b16 %v68
    %v936 = vunpack.c.h.b16 %v68
    %v937 = vunpack.c.l.b16 %v69
    %v938 = vunpack.c.h.b16 %v69
    %v939 = vunpack.c.l.b16 %v70
    %v940 = vunpack.c.h.b16 %v70
    %v941 = vunpack.c.l.b16 %v71
    %v942 = vunpack.c.h.b16 %v71
    %v943 = vunpack.c.l.b16 %v72
    %v944 = vunpack.c.h.b16 %v72
    %v945 = vunpack.c.l.b16 %v73
    %v946 = vunpack.c.h.b16 %v73
    %v947 = vunpack.c.l.b16 %v74
    %v948 = vunpack.c.h.b16 %v74
    %v949 = vunpack.c.l.b16 %v75
    %v950 = vunpack.c.h.b16 %v75
    %v951 = vunpack.c.l.b16 %v76
    %v952 = vunpack.c.h.b16 %v76
    %v953 = vunpack.c.l.b16 %v77
    %v954 = vunpack.c.h.b16 %v77
    %v955 = vunpack.c.l.b16 %v78
    %v956 = vunpack.c.h.b16 %v78
    %v957 = vunpack.c.l.b16 %v79
    %v958 = vunpack.c.h.b16 %v79
    %v959 = vunpack.c.l.b16 %v80
    %v960 = vunpack.c.h.b16 %v80
    %v961 = vunpack.c.l.b16 %v81
    %v962 = vunpack.c.h.b16 %v81
    %v963 = vunpack.c.l.b16 %v82
    %v964 = vunpack.c.h.b16 %v82
    %v965 = vunpack.c.l.b16 %v83
    %v966 = vunpack.c.h.b16 %v83
    %v967 = vunpack.c.l.b16 %v84
    %v968 = vunpack.c.h.b16 %v84
    %v969 = vunpack.c.l.b16 %v85
    %v970 = vunpack.c.h.b16 %v85
    %v971 = vunpack.c.l.b16 %v86
    %v972 = vunpack.c.h.b16 %v86
    %v973 = vunpack.c.l.b16 %v87
    %v974 = vunpack.c.h.b16 %v87
    %v975 = vunpack.c.l.b16 %v88
    %v976 = vunpack.c.h.b16 %v88
    %v977 = vunpack.c.l.b16 %v89
    %v978 = vunpack.c.h.b16 %v89
    %v979 = vunpack.c.l.b16 %v90
    %v980 = vunpack.c.h.b16 %v90
    %v981 = vunpack.c.l.b16 %v91
    %v982 = vunpack.c.h.b16 %v91
    %v983 = vunpack.c.l.b16 %v92
    %v984 = vunpack.c.h.b16 %v92
    %v985 = vunpack.c.l.b16 %v93
    %v986 = vunpack.c.h.b16 %v93
    %v987 = vunpack.c.l.b16 %v94
    %v988 = vunpack.c.h.b16 %v94
    %v989 = vunpack.c.l.b16 %v95
    %v990 = vunpack.c.h.b16 %v95
    %v991 = vunpack.c.l.b16 %v96
    %v992 = vunpack.c.h.b16 %v96
    %v993 = vunpack.c.l.b16 %v97
    %v994 = vunpack.c.h.b16 %v97
    %v995 = vunpack.c.l.b16 %v98
    %v996 = vunpack.c.h.b16 %v98
    %v997 = vunpack.c.l.b16 %v99
    %v998 = vunpack.c.h.b16 %v99
    %v999 = vunpack.c.l.b16 %v100
    %v1000 = vunpack.c.h.b16 %v100
    %v1001 = vunpack.c.l.b16 %v101
    %v1002 = vunpack.c.h.b16 %v101
    %v1003 = vunpack.c.l.b16 %v102
    %v1004 = vunpack.c.h.b16 %v102
    %v1005 = vunpack.c.l.b16 %v103
    %v1006 = vunpack.c.h.b16 %v103
    %v1007 = vunpack.c.l.b16 %v104
    %v1008 = vunpack.c.h.b16 %v104
    %v1009 = vunpack.c.l.b16 %v105
    %v1010 = vunpack.c.h.b16 %v105
    %v1011 = vunpack.c.l.b16 %v106
    %v1012 = vunpack.c.h.b16 %v106
    %v1013 = vunpack.c.l.b16 %v107
    %v1014 = vunpack.c.h.b16 %v107
    %v1015 = vunpack.c.l.b16 %v108
    %v1016 = vunpack.c.h.b16 %v108
    %v1017 = vunpack.c.l.b16 %v109
    %v1018 = vunpack.c.h.b16 %v109
    %v1019 = vunpack.c.l.b16 %v110
    %v1020 = vunpack.c.h.b16 %v110
    %v1021 = vunpack.c.l.b16 %v111
    %v1022 = vunpack.c.h.b16 %v111
    %v1023 = vunpack.c.l.b16 %v112
    %v1024 = vunpack.c.h.b16 %v112
    %v1025 = vunpack.c.l.b16 %v113
    %v1026 = vunpack.c.h.b16 %v113
    %v1027 = vunpack.c.l.b16 %v114
    %v1028 = vunpack.c.h.b16 %v114
    %v1029 = vunpack.c.l.b16 %v115
    %v1030 = vunpack.c.h.b16 %v115
    %v1031 = vunpack.c.l.b16 %v116
    %v1032 = vunpack.c.h.b16 %v116
    %v1033 = vunpack.c.l.b16 %v117
    %v1034 = vunpack.c.h.b16 %v117
    %v1035 = vunpack.c.l.b16 %v118
    %v1036 = vunpack.c.h.b16 %v118
    %v1037 = vunpack.c.l.b16 %v119
    %v1038 = vunpack.c.h.b16 %v119
    %v1039 = vunpack.c.l.b16 %v120
    %v1040 = vunpack.c.h.b16 %v120
    %v1041 = vunpack.c.l.b16 %v121
    %v1042 = vunpack.c.h.b16 %v121
    %v1043 = vunpack.c.l.b16 %v122
    %v1044 = vunpack.c.h.b16 %v122
    %v1045 = vunpack.c.l.b16 %v123
    %v1046 = vunpack.c.h.b16 %v123
    %v1047 = vunpack.c.l.b16 %v124
    %v1048 = vunpack.c.h.b16 %v124
    %v1049 = vunpack.c.l.b16 %v125
    %v1050 = vunpack.c.h.b16 %v125
    %v1051 = vunpack.c.l.b16 %v126
    %v1052 = vunpack.c.h.b16 %v126
    %v1053 = vunpack.c.l.b16 %v127
    %v1054 = vunpack.c.h.b16 %v127
    %v1055 = vunpack.c.l.b16 %v128
    %v1056 = vunpack.c.h.b16 %v128
    %v1057 = vunpack.c.l.b16 %v129
    %v1058 = vunpack.c.h.b16 %v129
    %v1059 = vunpack.c.l.b16 %v130
    %v1060 = vunpack.c.h.b16 %v130
    %v1061 = vunpack.c.l.b16 %v131
    %v1062 = vunpack.c.h.b16 %v131
    %v1063 = vunpack.c.l.b16 %v132
    %v1064 = vunpack.c.h.b16 %v132
    %v1065 = vunpack.c.l.b16 %v133
    %v1066 = vunpack.c.h.b16 %v133
    %v1067 = vunpack.c.l.b16 %v134
    %v1068 = vunpack.c.h.b16 %v134
    %v1069 = vunpack.c.l.b16 %v135
    %v1070 = vunpack.c.h.b16 %v135
    %v1071 = vunpack.c.l.b16 %v136
    %v1072 = vunpack.c.h.b16 %v136
    %v1073 = vunpack.c.l.b16 %v137
    %v1074 = vunpack.c.h.b16 %v137
    %v1075 = vunpack.c.l.b16 %v138
    %v1076 = vunpack.c.h.b16 %v138
    %v1077 = vunpack.c.l.b16 %v139
    %v1078 = vunpack.c.h.b16 %v139
    %v1079 = vunpack.c.l.b16 %v140
    %v1080 = vunpack.c.h.b16 %v140
    %v1081 = vunpack.c.l.b16 %v141
    %v1082 = vunpack.c.h.b16 %v141
    %v1083 = vunpack.c.l.b16 %v142
    %v1084 = vunpack.c.h.b16 %v142
    %v1085 = vunpack.c.l.b16 %v143
    %v1086 = vunpack.c.h.b16 %v143
    %v1087 = vunpack.c.l.b16 %v144
    %v1088 = vunpack.c.h.b16 %v144
    %v1089 = vunpack.c.l.b16 %v145
    %v1090 = vunpack.c.h.b16 %v145
    %v1091 = vunpack.c.l.b16 %v146
    %v1092 = vunpack.c.h.b16 %v146
    %v1093 = vunpack.c.l.b16 %v147
    %v1094 = vunpack.c.h.b16 %v147
    %v1095 = vunpack.c.l.b16 %v148
    %v1096 = vunpack.c.h.b16 %v148
    %v1097 = vunpack.c.l.b16 %v149
    %v1098 = vunpack.c.h.b16 %v149
    %v1099 = vunpack.c.l.b16 %v150
    %v1100 = vunpack.c.h.b16 %v150
    %v1101 = vunpack.c.l.b16 %v151
    %v1102 = vunpack.c.h.b16 %v151
    %v1103 = vunpack.c.l.b16 %v152
    %v1104 = vunpack.c.h.b16 %v152
    %v1105 = vunpack.c.l.b16 %v153
    %v1106 = vunpack.c.h.b16 %v153
    %v1107 = vunpack.c.l.b16 %v154
    %v1108 = vunpack.c.h.b16 %v154
    %v1109 = vunpack.c.l.b16 %v155
    %v1110 = vunpack.c.h.b16 %v155
    %v1111 = vunpack.c.l.b16 %v156
    %v1112 = vunpack.c.h.b16 %v156
    %v1113 = vunpack.c.l.b16 %v157
    %v1114 = vunpack.c.h.b16 %v157
    %v1115 = vunpack.c.l.b16 %v158
    %v1116 = vunpack.c.h.b16 %v158
    %v1117 = vunpack.c.l.b16 %v159
    %v1118 = vunpack.c.h.b16 %v159
    %v1119 = vunpack.c.l.b16 %v160
    %v1120 = vunpack.c.h.b16 %v160
    %v1121 = vunpack.c.l.b16 %v161
    %v1122 = vunpack.c.h.b16 %v161
    %v1123 = vunpack.c.l.b16 %v162
    %v1124 = vunpack.c.h.b16 %v162
    %v1125 = vunpack.c.l.b16 %v163
    %v1126 = vunpack.c.h.b16 %v163
    %v1127 = vunpack.c.l.b16 %v164
    %v1128 = vunpack.c.h.b16 %v164
    %v1129 = vunpack.c.l.b16 %v165
    %v1130 = vunpack.c.h.b16 %v165
    %v1131 = vunpack.c.l.b16 %v166
    %v1132 = vunpack.c.h.b16 %v166
    %v1133 = vunpack.c.l.b16 %v167
    %v1134 = vunpack.c.h.b16 %v167
    %v1135 = vunpack.c.l.b16 %v168
    %v1136 = vunpack.c.h.b16 %v168
    %v1137 = vunpack.c.l.b16 %v169
    %v1138 = vunpack.c.h.b16 %v169
    %v1139 = vunpack.c.l.b16 %v170
    %v1140 = vunpack.c.h.b16 %v170
    %v1141 = vunpack.c.l.b16 %v171
    %v1142 = vunpack.c.h.b16 %v171
    %v1143 = vunpack.c.l.b16 %v172
    %v1144 = vunpack.c.h.b16 %v172
    %v1145 = vunpack.c.l.b16 %v173
    %v1146 = vunpack.c.h.b16 %v173
    %v1147 = vunpack.c.l.b16 %v174
    %v1148 = vunpack.c.h.b16 %v174
    %v1149 = vunpack.c.l.b16 %v175
    %v1150 = vunpack.c.h.b16 %v175
    %v1151 = vunpack.c.l.b16 %v176
    %v1152 = vunpack.c.h.b16 %v176
    %v1153 = vunpack.c.l.b16 %v177
    %v1154 = vunpack.c.h.b16 %v177
    %v1155 = vunpack.c.l.b16 %v178
    %v1156 = vunpack.c.h.b16 %v178
    %v1157 = vunpack.c.l.b16 %v179
    %v1158 = vunpack.c.h.b16 %v179
    %v1159 = vunpack.c.l.b16 %v180
    %v1160 = vunpack.c.h.b16 %v180
    %v1161 = vunpack.c.l.b16 %v181
    %v1162 = vunpack.c.h.b16 %v181
    %v1163 = vunpack.c.l.b16 %v182
    %v1164 = vunpack.c.h.b16 %v182
    %v1165 = vunpack.c.l.b16 %v183
    %v1166 = vunpack.c.h.b16 %v183
    %v1167 = vunpack.c.l.b16 %v184
    %v1168 = vunpack.c.h.b16 %v184
    %v1169 = vunpack.c.l.b16 %v185
    %v1170 = vunpack.c.h.b16 %v185
    %v1171 = vunpack.c.l.b16 %v186
    %v1172 = vunpack.c.h.b16 %v186
    %v1173 = vunpack.c.l.b16 %v187
    %v1174 = vunpack.c.h.b16 %v187
    %v1175 = vunpack.c.l.b16 %v188
    %v1176 = vunpack.c.h.b16 %v188
    %v1177 = vunpack.c.l.b16 %v189
    %v1178 = vunpack.c.h.b16 %v189
    %v1179 = vunpack.c.l.b16 %v190
    %v1180 = vunpack.c.h.b16 %v190
    %v1181 = vunpack.c.l.b16 %v191
    %v1182 = vunpack.c.h.b16 %v191
    %v1183 = vunpack.c.l.b16 %v192
    %v1184 = vunpack.c.h.b16 %v192
    %v1185 = vunpack.c.l.b16 %v193
    %v1186 = vunpack.c.h.b16 %v193
    %v1187 = vunpack.c.l.b16 %v194
    %v1188 = vunpack.c.h.b16 %v194
    %v1189 = vunpack.c.l.b16 %v195
    %v1190 = vunpack.c.h.b16 %v195
    %v1191 = vunpack.c.l.b16 %v196
    %v1192 = vunpack.c.h.b16 %v196
    %v1193 = vunpack.c.l.b16 %v197
    %v1194 = vunpack.c.h.b16 %v197
    %v1195 = vunpack.c.l.b16 %v198
    %v1196 = vunpack.c.h.b16 %v198
    %v1197 = vunpack.c.l.b16 %v199
    %v1198 = vunpack.c.h.b16 %v199
    %v1199 = vunpack.c.l.b16 %v200
    %v1200 = vunpack.c.h.b16 %v200
    %v1201 = vunpack.c.l.b16 %v201
    %v1202 = vunpack.c.h.b16 %v201
    %v1203 = vunpack.c.l.b16 %v202
    %v1204 = vunpack.c.h.b16 %v202
    %v1205 = vunpack.c.l.b16 %v203
    %v1206 = vunpack.c.h.b16 %v203
    %v1207 = vunpack.c.l.b16 %v204
    %v1208 = vunpack.c.h.b16 %v204
    %v1209 = vunpack.c.l.b16 %v205
    %v1210 = vunpack.c.h.b16 %v205
    %v1211 = vunpack.c.l.b16 %v206
    %v1212 = vunpack.c.h.b16 %v206
    %v1213 = vunpack.c.l.b16 %v207
    %v1214 = vunpack.c.h.b16 %v207
    %v1215 = vunpack.c.l.b16 %v208
    %v1216 = vunpack.c.h.b16 %v208
    %v1217 = vunpack.c.l.b16 %v209
    %v1218 = vunpack.c.h.b16 %v209
    %v1219 = vunpack.c.l.b16 %v210
    %v1220 = vunpack.c.h.b16 %v210
    %v1221 = vunpack.c.l.b16 %v211
    %v1222 = vunpack.c.h.b16 %v211
    %v1223 = vunpack.c.l.b16 %v212
    %v1224 = vunpack.c.h.b16 %v212
    %v1225 = vunpack.c.l.b16 %v213
    %v1226 = vunpack.c.h.b16 %v213
    %v1227 = vunpack.c.l.b16 %v214
    %v1228 = vunpack.c.h.b16 %v214
    %v1229 = vunpack.c.l.b16 %v215
    %v1230 = vunpack.c.h.b16 %v215
    %v1231 = vunpack.c.l.b16 %v216
    %v1232 = vunpack.c.h.b16 %v216
    %v1233 = vunpack.c.l.b16 %v217
    %v1234 = vunpack.c.h.b16 %v217
    %v1235 = vunpack.c.l.b16 %v218
    %v1236 = vunpack.c.h.b16 %v218
    %v1237 = vunpack.c.l.b16 %v219
    %v1238 = vunpack.c.h.b16 %v219
    %v1239 = vunpack.c.l.b16 %v220
    %v1240 = vunpack.c.h.b16 %v220
    %v1241 = vunpack.c.l.b16 %v221
    %v1242 = vunpack.c.h.b16 %v221
    %v1243 = vunpack.c.l.b16 %v222
    %v1244 = vunpack.c.h.b16 %v222
    %v1245 = vunpack.c.l.b16 %v223
    %v1246 = vunpack.c.h.b16 %v223
    %v1247 = vunpack.c.l.b16 %v224
    %v1248 = vunpack.c.h.b16 %v224
    %v1249 = vunpack.c.l.b16 %v225
    %v1250 = vunpack.c.h.b16 %v225
    %v1251 = vunpack.c.l.b16 %v226
    %v1252 = vunpack.c.h.b16 %v226
    %v1253 = vunpack.c.l.b16 %v227
    %v1254 = vunpack.c.h.b16 %v227
    %v1255 = vunpack.c.l.b16 %v228
    %v1256 = vunpack.c.h.b16 %v228
    %v1257 = vunpack.c.l.b16 %v229
    %v1258 = vunpack.c.h.b16 %v229
    %v1259 = vunpack.c.l.b16 %v230
    %v1260 = vunpack.c.h.b16 %v230
    %v1261 = vunpack.c.l.b16 %v231
    %v1262 = vunpack.c.h.b16 %v231
    %v1263 = vunpack.c.l.b16 %v232
    %v1264 = vunpack.c.h.b16 %v232
    %v1265 = vunpack.c.l.b16 %v233
    %v1266 = vunpack.c.h.b16 %v233
    %v1267 = vunpack.c.l.b16 %v234
    %v1268 = vunpack.c.h.b16 %v234
    %v1269 = vunpack.c.l.b16 %v235
    %v1270 = vunpack.c.h.b16 %v235
    %v1271 = vunpack.c.l.b16 %v236
    %v1272 = vunpack.c.h.b16 %v236
    %v1273 = vunpack.c.l.b16 %v237
    %v1274 = vunpack.c.h.b16 %v237
    %v1275 = vunpack.c.l.b16 %v238
    %v1276 = vunpack.c.h.b16 %v238
    %v1277 = vunpack.c.l.b16 %v239
    %v1278 = vunpack.c.h.b16 %v239
    %v1279 = vunpack.c.l.b16 %v240
    %v1280 = vunpack.c.h.b16 %v240
    %v1281 = vunpack.c.l.b16 %v241
    %v1282 = vunpack.c.h.b16 %v241
    %v1283 = vunpack.c.l.b16 %v242
    %v1284 = vunpack.c.h.b16 %v242
    %v1285 = vunpack.c.l.b16 %v243
    %v1286 = vunpack.c.h.b16 %v243
    %v1287 = vunpack.c.l.b16 %v244
    %v1288 = vunpack.c.h.b16 %v244
    %v1289 = vunpack.c.l.b16 %v245
    %v1290 = vunpack.c.h.b16 %v245
    %v1291 = vunpack.c.l.b16 %v246
    %v1292 = vunpack.c.h.b16 %v246
    %v1293 = vunpack.c.l.b16 %v247
    %v1294 = vunpack.c.h.b16 %v247
    %v1295 = vunpack.c.l.b16 %v248
    %v1296 = vunpack.c.h.b16 %v248
    %v1297 = vunpack.c.l.b16 %v249
    %v1298 = vunpack.c.h.b16 %v249
    %v1299 = vunpack.c.l.b16 %v250
    %v1300 = vunpack.c.h.b16 %v250
    %v1301 = vunpack.c.l.b16 %v251
    %v1302 = vunpack.c.h.b16 %v251
    %v1303 = vunpack.c.l.b16 %v252
    %v1304 = vunpack.c.h.b16 %v252
    %v1305 = vunpack.c.l.b16 %v253
    %v1306 = vunpack.c.h.b16 %v253
    %v1307 = vunpack.c.l.b16 %v254
    %v1308 = vunpack.c.h.b16 %v254
    %v1309 = vunpack.c.l.b16 %v255
    %v1310 = vunpack.c.h.b16 %v255
    %v1311 = vunpack.c.l.b16 %v256
    %v1312 = vunpack.c.h.b16 %v256
    %v1313 = vunpack.c.l.b16 %v257
    %v1314 = vunpack.c.h.b16 %v257
    %v1315 = vunpack.c.l.b16 %v258
    %v1316 = vunpack.c.h.b16 %v258
    %v1317 = vunpack.c.l.b16 %v259
    %v1318 = vunpack.c.h.b16 %v259
    %v1319 = vunpack.c.l.b16 %v260
    %v1320 = vunpack.c.h.b16 %v260
    %v1321 = vunpack.c.l.b16 %v261
    %v1322 = vunpack.c.h.b16 %v261
    %v1323 = vunpack.c.l.b16 %v262
    %v1324 = vunpack.c.h.b16 %v262
    %v1325 = vunpack.c.l.b16 %v263
    %v1326 = vunpack.c.h.b16 %v263
    %v1327 = vunpack.c.l.b16 %v264
    %v1328 = vunpack.c.h.b16 %v264
    %v1329 = vunpack.c.l.b16 %v265
    %v1330 = vunpack.c.h.b16 %v265
    %v1331 = vunpack.c.l.b16 %v266
    %v1332 = vunpack.c.h.b16 %v266
    %v1333 = vunpack.c.l.b16 %v267
    %v1334 = vunpack.c.h.b16 %v267
    %v1335 = vunpack.c.l.b16 %v268
    %v1336 = vunpack.c.h.b16 %v268
    %v1337 = vunpack.c.l.b16 %v269
    %v1338 = vunpack.c.h.b16 %v269
    %v1339 = vunpack.c.l.b16 %v270
    %v1340 = vunpack.c.h.b16 %v270
    %v1341 = vunpack.c.l.b16 %v271
    %v1342 = vunpack.c.h.b16 %v271
    %v1343 = vunpack.c.l.b16 %v272
    %v1344 = vunpack.c.h.b16 %v272
    %v1345 = vunpack.c.l.b16 %v273
    %v1346 = vunpack.c.h.b16 %v273
    %v1347 = vunpack.c.l.b16 %v274
    %v1348 = vunpack.c.h.b16 %v274
    %v1349 = vunpack.c.l.b16 %v275
    %v1350 = vunpack.c.h.b16 %v275
    %v1351 = vunpack.c.l.b16 %v276
    %v1352 = vunpack.c.h.b16 %v276
    %v1353 = vunpack.c.l.b16 %v277
    %v1354 = vunpack.c.h.b16 %v277
    %v1355 = vunpack.c.l.b16 %v278
    %v1356 = vunpack.c.h.b16 %v278
    %v1357 = vunpack.c.l.b16 %v279
    %v1358 = vunpack.c.h.b16 %v279
    %v1359 = vunpack.c.l.b16 %v280
    %v1360 = vunpack.c.h.b16 %v280
    %v1361 = vunpack.c.l.b16 %v281
    %v1362 = vunpack.c.h.b16 %v281
    %v1363 = vunpack.c.l.b16 %v282
    %v1364 = vunpack.c.h.b16 %v282
    %v1365 = vunpack.c.l.b16 %v283
    %v1366 = vunpack.c.h.b16 %v283
    %v1367 = vunpack.c.l.b16 %v284
    %v1368 = vunpack.c.h.b16 %v284
    %v1369 = vunpack.c.l.b16 %v285
    %v1370 = vunpack.c.h.b16 %v285
    %v1371 = vunpack.c.l.b16 %v286
    %v1372 = vunpack.c.h.b16 %v286
    %v1373 = vunpack.c.l.b16 %v287
    %v1374 = vunpack.c.h.b16 %v287
    %v1375 = vunpack.c.l.b16 %v288
    %v1376 = vunpack.c.h.b16 %v288
    %v1377 = vunpack.c.l.b16 %v289
    %v1378 = vunpack.c.h.b16 %v289
    %v1379 = vunpack.c.l.b16 %v290
    %v1380 = vunpack.c.h.b16 %v290
    %v1381 = vunpack.c.l.b16 %v291
    %v1382 = vunpack.c.h.b16 %v291
    %v1383 = vunpack.c.l.b16 %v292
    %v1384 = vunpack.c.h.b16 %v292
    %v1385 = vunpack.c.l.b16 %v293
    %v1386 = vunpack.c.h.b16 %v293
    %v1387 = vunpack.c.l.b16 %v294
    %v1388 = vunpack.c.h.b16 %v294
    %v1389 = vunpack.c.l.b16 %v295
    %v1390 = vunpack.c.h.b16 %v295
    %v1391 = vunpack.c.l.b16 %v296
    %v1392 = vunpack.c.h.b16 %v296
    %v1393 = vunpack.c.l.b16 %v297
    %v1394 = vunpack.c.h.b16 %v297
    %v1395 = vunpack.c.l.b16 %v298
    %v1396 = vunpack.c.h.b16 %v298
    %v1397 = vunpack.c.l.b16 %v299
    %v1398 = vunpack.c.h.b16 %v299
    %v1399 = vunpack.c.l.b16 %v300
    %v1400 = vunpack.c.h.b16 %v300
    %v1401 = vunpack.c.l.b16 %v301
    %v1402 = vunpack.c.h.b16 %v301
    %v1403 = vunpack.c.l.b16 %v302
    %v1404 = vunpack.c.h.b16 %v302
    %v1405 = vunpack.c.l.b16 %v303
    %v1406 = vunpack.c.h.b16 %v303
    %v1407 = vunpack.c.l.b16 %v304
    %v1408 = vunpack.c.h.b16 %v304
    %v1409 = vunpack.c.l.b16 %v305
    %v1410 = vunpack.c.h.b16 %v305
    %v1411 = vunpack.c.l.b16 %v306
    %v1412 = vunpack.c.h.b16 %v306
    %v1413 = vunpack.c.l.b16 %v307
    %v1414 = vunpack.c.h.b16 %v307
    %v1415 = vunpack.c.l.b16 %v308
    %v1416 = vunpack.c.h.b16 %v308
    %v1417 = vunpack.c.l.b16 %v309
    %v1418 = vunpack.c.h.b16 %v309
    %v1419 = vunpack.c.l.b16 %v310
    %v1420 = vunpack.c.h.b16 %v310
    %v1421 = vunpack.c.l.b16 %v311
    %v1422 = vunpack.c.h.b16 %v311
    %v1423 = vunpack.c.l.b16 %v312
    %v1424 = vunpack.c.h.b16 %v312
    %v1425 = vunpack.c.l.b16 %v313
    %v1426 = vunpack.c.h.b16 %v313
    %v1427 = vunpack.c.l.b16 %v314
    %v1428 = vunpack.c.h.b16 %v314
    %v1429 = vunpack.c.l.b16 %v315
    %v1430 = vunpack.c.h.b16 %v315
    %v1431 = vunpack.c.l.b16 %v316
    %v1432 = vunpack.c.h.b16 %v316
    %v1433 = vunpack.c.l.b16 %v317
    %v1434 = vunpack.c.h.b16 %v317
    %v1435 = vunpack.c.l.b16 %v318
    %v1436 = vunpack.c.h.b16 %v318
    %v1437 = vunpack.c.l.b16 %v319
    %v1438 = vunpack.c.h.b16 %v319
    %v1439 = vunpack.c.l.b16 %v320
    %v1440 = vunpack.c.h.b16 %v320
    %v1441 = vunpack.c.l.b16 %v321
    %v1442 = vunpack.c.h.b16 %v321
    %v1443 = vunpack.c.l.b16 %v322
    %v1444 = vunpack.c.h.b16 %v322
    %v1445 = vunpack.c.l.b16 %v323
    %v1446 = vunpack.c.h.b16 %v323
    %v1447 = vunpack.c.l.b16 %v324
    %v1448 = vunpack.c.h.b16 %v324
    %v1449 = vunpack.c.l.b16 %v325
    %v1450 = vunpack.c.h.b16 %v325
    %v1451 = vunpack.c.l.b16 %v326
    %v1452 = vunpack.c.h.b16 %v326
    %v1453 = vunpack.c.l.b16 %v327
    %v1454 = vunpack.c.h.b16 %v327
    %v1455 = vunpack.c.l.b16 %v328
    %v1456 = vunpack.c.h.b16 %v328
    %v1457 = vunpack.c.l.b16 %v329
    %v1458 = vunpack.c.h.b16 %v329
    %v1459 = vunpack.c.l.b16 %v330
    %v1460 = vunpack.c.h.b16 %v330
    %v1461 = vunpack.c.l.b16 %v331
    %v1462 = vunpack.c.h.b16 %v331
    %v1463 = vunpack.c.l.b16 %v332
    %v1464 = vunpack.c.h.b16 %v332
    %v1465 = vunpack.c.l.b16 %v333
    %v1466 = vunpack.c.h.b16 %v333
    %v1467 = vunpack.c.l.b16 %v334
    %v1468 = vunpack.c.h.b16 %v334
    %v1469 = vunpack.c.l.b16 %v335
    %v1470 = vunpack.c.h.b16 %v335
    %v1471 = vunpack.c.l.b16 %v336
    %v1472 = vunpack.c.h.b16 %v336
    %v1473 = vunpack.c.l.b16 %v337
    %v1474 = vunpack.c.h.b16 %v337
    %v1475 = vunpack.c.l.b16 %v338
    %v1476 = vunpack.c.h.b16 %v338
    %v1477 = vunpack.c.l.b16 %v339
    %v1478 = vunpack.c.h.b16 %v339
    %v1479 = vunpack.c.l.b16 %v340
    %v1480 = vunpack.c.h.b16 %v340
    %v1481 = vunpack.c.l.b16 %v341
    %v1482 = vunpack.c.h.b16 %v341
    %v1483 = vunpack.c.l.b16 %v342
    %v1484 = vunpack.c.h.b16 %v342
    %v1485 = vunpack.c.l.b16 %v343
    %v1486 = vunpack.c.h.b16 %v343
    %v1487 = vunpack.c.l.b16 %v344
    %v1488 = vunpack.c.h.b16 %v344
    %v1489 = vunpack.c.l.b16 %v345
    %v1490 = vunpack.c.h.b16 %v345
    %v1491 = vunpack.c.l.b16 %v346
    %v1492 = vunpack.c.h.b16 %v346
    %v1493 = vunpack.c.l.b16 %v347
    %v1494 = vunpack.c.h.b16 %v347
    %v1495 = vunpack.c.l.b16 %v348
    %v1496 = vunpack.c.h.b16 %v348
    %v1497 = vunpack.c.l.b16 %v349
    %v1498 = vunpack.c.h.b16 %v349
    %v1499 = vunpack.c.l.b16 %v350
    %v1500 = vunpack.c.h.b16 %v350
    %v1501 = vunpack.c.l.b16 %v351
    %v1502 = vunpack.c.h.b16 %v351
    %v1503 = vunpack.c.l.b16 %v352
    %v1504 = vunpack.c.h.b16 %v352
    %v1505 = vunpack.c.l.b16 %v353
    %v1506 = vunpack.c.h.b16 %v353
    %v1507 = vunpack.c.l.b16 %v354
    %v1508 = vunpack.c.h.b16 %v354
    %v1509 = vunpack.c.l.b16 %v355
    %v1510 = vunpack.c.h.b16 %v355
    %v1511 = vunpack.c.l.b16 %v356
    %v1512 = vunpack.c.h.b16 %v356
    %v1513 = vunpack.c.l.b16 %v357
    %v1514 = vunpack.c.h.b16 %v357
    %v1515 = vunpack.c.l.b16 %v358
    %v1516 = vunpack.c.h.b16 %v358
    %v1517 = vunpack.c.l.b16 %v359
    %v1518 = vunpack.c.h.b16 %v359
    %v1519 = vunpack.c.l.b16 %v360
    %v1520 = vunpack.c.h.b16 %v360
    %v1521 = vunpack.c.l.b16 %v361
    %v1522 = vunpack.c.h.b16 %v361
    %v1523 = vunpack.c.l.b16 %v362
    %v1524 = vunpack.c.h.b16 %v362
    %v1525 = vunpack.c.l.b16 %v363
    %v1526 = vunpack.c.h.b16 %v363
    %v1527 = vunpack.c.l.b16 %v364
    %v1528 = vunpack.c.h.b16 %v364
    %v1529 = vunpack.c.l.b16 %v365
    %v1530 = vunpack.c.h.b16 %v365
    %v1531 = vunpack.c.l.b16 %v366
    %v1532 = vunpack.c.h.b16 %v366
    %v1533 = vunpack.c.l.b16 %v367
    %v1534 = vunpack.c.h.b16 %v367
    %v1535 = vunpack.c.l.b16 %v368
    %v1536 = vunpack.c.h.b16 %v368
    %v1537 = vunpack.c.l.b16 %v369
    %v1538 = vunpack.c.h.b16 %v369
    %v1539 = vunpack.c.l.b16 %v370
    %v1540 = vunpack.c.h.b16 %v370
    %v1541 = vunpack.c.l.b16 %v371
    %v1542 = vunpack.c.h.b16 %v371
    %v1543 = vunpack.c.l.b16 %v372
    %v1544 = vunpack.c.h.b16 %v372
    %v1545 = vunpack.c.l.b16 %v373
    %v1546 = vunpack.c.h.b16 %v373
    %v1547 = vunpack.c.l.b16 %v374
    %v1548 = vunpack.c.h.b16 %v374
    %v1549 = vunpack.c.l.b16 %v375
    %v1550 = vunpack.c.h.b16 %v375
    %v1551 = vunpack.c.l.b16 %v376
    %v1552 = vunpack.c.h.b16 %v376
    %v1553 = vunpack.c.l.b16 %v377
    %v1554 = vunpack.c.h.b16 %v377
    %v1555 = vunpack.c.l.b16 %v378
    %v1556 = vunpack.c.h.b16 %v378
    %v1557 = vunpack.c.l.b16 %v379
    %v1558 = vunpack.c.h.b16 %v379
    %v1559 = vunpack.c.l.b16 %v380
    %v1560 = vunpack.c.h.b16 %v380
    %v1561 = vunpack.c.l.b16 %v381
    %v1562 = vunpack.c.h.b16 %v381
    %v1563 = vunpack.c.l.b16 %v382
    %v1564 = vunpack.c.h.b16 %v382
    %v1565 = vunpack.c.l.b16 %v383
    %v1566 = vunpack.c.h.b16 %v383
    %v1567 = vunpack.c.l.b16 %v384
    %v1568 = vunpack.c.h.b16 %v384
    %v1569 = vunpack.c.l.b16 %v385
    %v1570 = vunpack.c.h.b16 %v385
    %v1571 = vunpack.c.l.b16 %v386
    %v1572 = vunpack.c.h.b16 %v386
    %v1573 = vunpack.c.l.b16 %v387
    %v1574 = vunpack.c.h.b16 %v387
    %v1575 = vunpack.c.l.b16 %v388
    %v1576 = vunpack.c.h.b16 %v388
    %v1577 = vunpack.c.l.b16 %v389
    %v1578 = vunpack.c.h.b16 %v389
    %v1579 = vunpack.c.l.b16 %v390
    %v1580 = vunpack.c.h.b16 %v390
    %v1581 = vunpack.c.l.b16 %v391
    %v1582 = vunpack.c.h.b16 %v391
    %v1583 = vunpack.c.l.b16 %v392
    %v1584 = vunpack.c.h.b16 %v392
    %v1585 = vunpack.c.l.b16 %v393
    %v1586 = vunpack.c.h.b16 %v393
    %v1587 = vunpack.c.l.b16 %v394
    %v1588 = vunpack.c.h.b16 %v394
    %v1589 = vunpack.c.l.b16 %v395
    %v1590 = vunpack.c.h.b16 %v395
    %v1591 = vunpack.c.l.b16 %v396
    %v1592 = vunpack.c.h.b16 %v396
    %v1593 = vunpack.c.l.b16 %v397
    %v1594 = vunpack.c.h.b16 %v397
    %v1595 = vunpack.c.l.b16 %v398
    %v1596 = vunpack.c.h.b16 %v398
    %v1597 = vunpack.c.l.b16 %v399
    %v1598 = vunpack.c.h.b16 %v399
    %v1599 = vunpack.c.l.b16 %v400
    %v1600 = vunpack.c.h.b16 %v400
    %v1601 = vunpack.c.l.b16 %v401
    %v1602 = vunpack.c.h.b16 %v401
    %v1603 = vunpack.c.l.b16 %v402
    %v1604 = vunpack.c.h.b16 %v402
    %v1605 = vunpack.c.l.b16 %v403
    %v1606 = vunpack.c.h.b16 %v403
    %v1607 = vunpack.c.l.b16 %v404
    %v1608 = vunpack.c.h.b16 %v404
    %v1609 = vunpack.c.l.b16 %v405
    %v1610 = vunpack.c.h.b16 %v405
    %v1611 = vunpack.c.l.b16 %v406
    %v1612 = vunpack.c.h.b16 %v406
    %v1613 = vunpack.c.l.b16 %v407
    %v1614 = vunpack.c.h.b16 %v407
    %v1615 = vunpack.c.l.b16 %v408
    %v1616 = vunpack.c.h.b16 %v408
    %v1617 = vunpack.c.l.b16 %v409
    %v1618 = vunpack.c.h.b16 %v409
    %v1619 = vunpack.c.l.b16 %v410
    %v1620 = vunpack.c.h.b16 %v410
    %v1621 = vunpack.c.l.b16 %v411
    %v1622 = vunpack.c.h.b16 %v411
    %v1623 = vunpack.c.l.b16 %v412
    %v1624 = vunpack.c.h.b16 %v412
    %v1625 = vunpack.c.l.b16 %v413
    %v1626 = vunpack.c.h.b16 %v413
    %v1627 = vunpack.c.l.b16 %v414
    %v1628 = vunpack.c.h.b16 %v414
    %v1629 = vunpack.c.l.b16 %v415
    %v1630 = vunpack.c.h.b16 %v415
    %v1631 = vunpack.c.l.b16 %v416
    %v1632 = vunpack.c.h.b16 %v416
    %v1633 = vunpack.c.l.b16 %v417
    %v1634 = vunpack.c.h.b16 %v417
    %v1635 = vunpack.c.l.b16 %v418
    %v1636 = vunpack.c.h.b16 %v418
    %v1637 = vunpack.c.l.b16 %v419
    %v1638 = vunpack.c.h.b16 %v419
    %v1639 = vunpack.c.l.b16 %v420
    %v1640 = vunpack.c.h.b16 %v420
    %v1641 = vunpack.c.l.b16 %v421
    %v1642 = vunpack.c.h.b16 %v421
    %v1643 = vunpack.c.l.b16 %v422
    %v1644 = vunpack.c.h.b16 %v422
    %v1645 = vunpack.c.l.b16 %v423
    %v1646 = vunpack.c.h.b16 %v423
    %v1647 = vunpack.c.l.b16 %v424
    %v1648 = vunpack.c.h.b16 %v424
    %v1649 = vunpack.c.l.b16 %v425
    %v1650 = vunpack.c.h.b16 %v425
    %v1651 = vunpack.c.l.b16 %v426
    %v1652 = vunpack.c.h.b16 %v426
    %v1653 = vunpack.c.l.b16 %v427
    %v1654 = vunpack.c.h.b16 %v427
    %v1655 = vunpack.c.l.b16 %v428
    %v1656 = vunpack.c.h.b16 %v428
    %v1657 = vunpack.c.l.b16 %v429
    %v1658 = vunpack.c.h.b16 %v429
    %v1659 = vunpack.c.l.b16 %v430
    %v1660 = vunpack.c.h.b16 %v430
    %v1661 = vunpack.c.l.b16 %v431
    %v1662 = vunpack.c.h.b16 %v431
    %v1663 = vunpack.c.l.b16 %v432
    %v1664 = vunpack.c.h.b16 %v432
    %v1665 = vunpack.c.l.b16 %v433
    %v1666 = vunpack.c.h.b16 %v433
    %v1667 = vunpack.c.l.b16 %v434
    %v1668 = vunpack.c.h.b16 %v434
    %v1669 = vunpack.c.l.b16 %v435
    %v1670 = vunpack.c.h.b16 %v435
    %v1671 = vunpack.c.l.b16 %v436
    %v1672 = vunpack.c.h.b16 %v436
    %v1673 = vunpack.c.l.b16 %v437
    %v1674 = vunpack.c.h.b16 %v437
    %v1675 = vunpack.c.l.b16 %v438
    %v1676 = vunpack.c.h.b16 %v438
    %v1677 = vunpack.c.l.b16 %v439
    %v1678 = vunpack.c.h.b16 %v439
    %v1679 = vunpack.c.l.b16 %v440
    %v1680 = vunpack.c.h.b16 %v440
    %v1681 = vpack.c.b16 %v925, %v913
    %v1682 = vpack.c.b16 %v926, %v914
    %v1683 = vpack.c.b16 %v927, %v915
    %v1684 = vpack.c.b16 %v928, %v916
    %v1685 = vpack.c.b16 %v929, %v917
    %v1686 = vpack.c.b16 %v930, %v918
    %v1687 = vpack.c.b16 %v931, %v919
    %v1688 = vpack.c.b16 %v932, %v920
    %v1689 = vpack.c.b16 %v933, %v921
    %v1690 = vpack.c.b16 %v934, %v922
    %v1691 = vpack.c.b16 %v935, %v923
    %v1692 = vpack.c.b16 %v936, %v924
    %v1693 = vpack.c.b16 %v949, %v937
    %v1694 = vpack.c.b16 %v950, %v938
    %v1695 = vpack.c.b16 %v951, %v939
    %v1696 = vpack.c.b16 %v952, %v940
    %v1697 = vpack.c.b16 %v953, %v941
    %v1698 = vpack.c.b16 %v954, %v942
    %v1699 = vpack.c.b16 %v955, %v943
    %v1700 = vpack.c.b16 %v956, %v944
    %v1701 = vpack.c.b16 %v957, %v945
    %v1702 = vpack.c.b16 %v958, %v946
    %v1703 = vpack.c.b16 %v959, %v947
    %v1704 = vpack.c.b16 %v960, %v948
    %v1705 = vpack.c.b16 %v973, %v961
    %v1706 = vpack.c.b16 %v974, %v962
    %v1707 = vpack.c.b16 %v975, %v963
    %v1708 = vpack.c.b16 %v976, %v964
    %v1709 = vpack.c.b16 %v977, %v965
    %v1710 = vpack.c.b16 %v978, %v966
    %v1711 = vpack.c.b16 %v979, %v967
    %v1712 = vpack.c.b16 %v980, %v968
    %v1713 = vpack.c.b16 %v981, %v969
    %v1714 = vpack.c.b16 %v982, %v970
    %v1715 = vpack.c.b16 %v983, %v971
    %v1716 = vpack.c.b16 %v984, %v972
    %v1717 = vpack.c.b16 %v997, %v985
    %v1718 = vpack.c.b16 %v998, %v986
    %v1719 = vpack.c.b16 %v999, %v987
    %v1720 = vpack.c.b16 %v1000, %v988
    %v1721 = vpack.c.b16 %v1001, %v989
    %v1722 = vpack.c.b16 %v1002, %v990
    %v1723 = vpack.c.b16 %v1003, %v991
    %v1724 = vpack.c.b16 %v1004, %v992
    %v1725 = vpack.c.b16 %v1005, %v993
    %v1726 = vpack.c.b16 %v1006, %v994
    %v1727 = vpack.c.b16 %v1007, %v995
    %v1728 = vpack.c.b16 %v1008, %v996
    %v1729 = vpack.c.b16 %v1021, %v1009
    %v1730 = vpack.c.b16 %v1022, %v1010
    %v1731 = vpack.c.b16 %v1023, %v1011
    %v1732 = vpack.c.b16 %v1024, %v1012
    %v1733 = vpack.c.b16 %v1025, %v1013
    %v1734 = vpack.c.b16 %v1026, %v1014
    %v1735 = vpack.c.b16 %v1027, %v1015
    %v1736 = vpack.c.b16 %v1028, %v1016
    %v1737 = vpack.c.b16 %v1029, %v1017
    %v1738 = vpack.c.b16 %v1030, %v1018
    %v1739 = vpack.c.b16 %v1031, %v1019
    %v1740 = vpack.c.b16 %v1032, %v1020
    %v1741 = vpack.c.b16 %v1045, %v1033
    %v1742 = vpack.c.b16 %v1046, %v1034
    %v1743 = vpack.c.b16 %v1047, %v1035
    %v1744 = vpack.c.b16 %v1048, %v1036
    %v1745 = vpack.c.b16 %v1049, %v1037
    %v1746 = vpack.c.b16 %v1050, %v1038
    %v1747 = vpack.c.b16 %v1051, %v1039
    %v1748 = vpack.c.b16 %v1052, %v1040
    %v1749 = vpack.c.b16 %v1053, %v1041
    %v1750 = vpack.c.b16 %v1054, %v1042
    %v1751 = vpack.c.b16 %v1055, %v1043
    %v1752 = vpack.c.b16 %v1056, %v1044
    %v1753 = vpack.c.b16 %v1069, %v1057
    %v1754 = vpack.c.b16 %v1070, %v1058
    %v1755 = vpack.c.b16 %v1071, %v1059
    %v1756 = vpack.c.b16 %v1072, %v1060
    %v1757 = vpack.c.b16 %v1073, %v1061
    %v1758 = vpack.c.b16 %v1074, %v1062
    %v1759 = vpack.c.b16 %v1075, %v1063
    %v1760 = vpack.c.b16 %v1076, %v1064
    %v1761 = vpack.c.b16 %v1077, %v1065
    %v1762 = vpack.c.b16 %v1078, %v1066
    %v1763 = vpack.c.b16 %v1079, %v1067
    %v1764 = vpack.c.b16 %v1080, %v1068
    %v1765 = vpack.c.b16 %v1093, %v1081
    %v1766 = vpack.c.b16 %v1094, %v1082
    %v1767 = vpack.c.b16 %v1095, %v1083
    %v1768 = vpack.c.b16 %v1096, %v1084
    %v1769 = vpack.c.b16 %v1097, %v1085
    %v1770 = vpack.c.b16 %v1098, %v1086
    %v1771 = vpack.c.b16 %v1099, %v1087
    %v1772 = vpack.c.b16 %v1100, %v1088
    %v1773 = vpack.c.b16 %v1101, %v1089
    %v1774 = vpack.c.b16 %v1102, %v1090
    %v1775 = vpack.c.b16 %v1103, %v1091
    %v1776 = vpack.c.b16 %v1104, %v1092
    %v1777 = vpack.c.b16 %v1117, %v1105
    %v1778 = vpack.c.b16 %v1118, %v1106
    %v1779 = vpack.c.b16 %v1119, %v1107
    %v1780 = vpack.c.b16 %v1120, %v1108
    %v1781 = vpack.c.b16 %v1121, %v1109
    %v1782 = vpack.c.b16 %v1122, %v1110
    %v1783 = vpack.c.b16 %v1123, %v1111
    %v1784 = vpack.c.b16 %v1124, %v1112
    %v1785 = vpack.c.b16 %v1125, %v1113
    %v1786 = vpack.c.b16 %v1126, %v1114
    %v1787 = vpack.c.b16 %v1127, %v1115
    %v1788 = vpack.c.b16 %v1128, %v1116
    %v1789 = vpack.c.b16 %v1141, %v1129
    %v1790 = vpack.c.b16 %v1142, %v1130
    %v1791 = vpack.c.b16 %v1143, %v1131
    %v1792 = vpack.c.b16 %v1144, %v1132
    %v1793 = vpack.c.b16 %v1145, %v1133
    %v1794 = vpack.c.b16 %v1146, %v1134
    %v1795 = vpack.c.b16 %v1147, %v1135
    %v1796 = vpack.c.b16 %v1148, %v1136
    %v1797 = vpack.c.b16 %v1149, %v1137
    %v1798 = vpack.c.b16 %v1150, %v1138
    %v1799 = vpack.c.b16 %v1151, %v1139
    %v1800 = vpack.c.b16 %v1152, %v1140
    %v1801 = vpack.c.b16 %v1165, %v1153
    %v1802 = vpack.c.b16 %v1166, %v1154
    %v1803 = vpack.c.b16 %v1167, %v1155
    %v1804 = vpack.c.b16 %v1168, %v1156
    %v1805 = vpack.c.b16 %v1169, %v1157
    %v1806 = vpack.c.b16 %v1170, %v1158
    %v1807 = vpack.c.b16 %v1171, %v1159
    %v1808 = vpack.c.b16 %v1172, %v1160
    %v1809 = vpack.c.b16 %v1173, %v1161
    %v1810 = vpack.c.b16 %v1174, %v1162
    %v1811 = vpack.c.b16 %v1175, %v1163
    %v1812 = vpack.c.b16 %v1176, %v1164
    %v1813 = vpack.c.b16 %v1189, %v1177
    %v1814 = vpack.c.b16 %v1190, %v1178
    %v1815 = vpack.c.b16 %v1191, %v1179
    %v1816 = vpack.c.b16 %v1192, %v1180
    %v1817 = vpack.c.b16 %v1193, %v1181
    %v1818 = vpack.c.b16 %v1194, %v1182
    %v1819 = vpack.c.b16 %v1195, %v1183
    %v1820 = vpack.c.b16 %v1196, %v1184
    %v1821 = vpack.c.b16 %v1197, %v1185
    %v1822 = vpack.c.b16 %v1198, %v1186
    %v1823 = vpack.c.b16 %v1199, %v1187
    %v1824 = vpack.c.b16 %v1200, %v1188
    %v1825 = vpack.c.b16 %v1213, %v1201
    %v1826 = vpack.c.b16 %v1214, %v1202
    %v1827 = vpack.c.b16 %v1215, %v1203
    %v1828 = vpack.c.b16 %v1216, %v1204
    %v1829 = vpack.c.b16 %v1217, %v1205
    %v1830 = vpack.c.b16 %v1218, %v1206
    %v1831 = vpack.c.b16 %v1219, %v1207
    %v1832 = vpack.c.b16 %v1220, %v1208
    %v1833 = vpack.c.b16 %v1221, %v1209
    %v1834 = vpack.c.b16 %v1222, %v1210
    %v1835 = vpack.c.b16 %v1223, %v1211
    %v1836 = vpack.c.b16 %v1224, %v1212
    %v1837 = vpack.c.b16 %v1237, %v1225
    %v1838 = vpack.c.b16 %v1238, %v1226
    %v1839 = vpack.c.b16 %v1239, %v1227
    %v1840 = vpack.c.b16 %v1240, %v1228
    %v1841 = vpack.c.b16 %v1241, %v1229
    %v1842 = vpack.c.b16 %v1242, %v1230
    %v1843 = vpack.c.b16 %v1243, %v1231
    %v1844 = vpack.c.b16 %v1244, %v1232
    %v1845 = vpack.c.b16 %v1245, %v1233
    %v1846 = vpack.c.b16 %v1246, %v1234
    %v1847 = vpack.c.b16 %v1247, %v1235
    %v1848 = vpack.c.b16 %v1248, %v1236
    %v1849 = vpack.c.b16 %v1261, %v1249
    %v1850 = vpack.c.b16 %v1262, %v1250
    %v1851 = vpack.c.b16 %v1263, %v1251
    %v1852 = vpack.c.b16 %v1264, %v1252
    %v1853 = vpack.c.b16 %v1265, %v1253
    %v1854 = vpack.c.b16 %v1266, %v1254
    %v1855 = vpack.c.b16 %v1267, %v1255
    %v1856 = vpack.c.b16 %v1268, %v1256
    %v1857 = vpack.c.b16 %v1269, %v1257
    %v1858 = vpack.c.b16 %v1270, %v1258
    %v1859 = vpack.c.b16 %v1271, %v1259
    %v1860 = vpack.c.b16 %v1272, %v1260
    %v1861 = vpack.c.b16 %v1285, %v1273
    %v1862 = vpack.c.b16 %v1286, %v1274
    %v1863 = vpack.c.b16 %v1287, %v1275
    %v1864 = vpack.c.b16 %v1288, %v1276
    %v1865 = vpack.c.b16 %v1289, %v1277
    %v1866 = vpack.c.b16 %v1290, %v1278
    %v1867 = vpack.c.b16 %v1291, %v1279
    %v1868 = vpack.c.b16 %v1292, %v1280
    %v1869 = vpack.c.b16 %v1293, %v1281
    %v1870 = vpack.c.b16 %v1294, %v1282
    %v1871 = vpack.c.b16 %v1295, %v1283
    %v1872 = vpack.c.b16 %v1296, %v1284
    %v1873 = vpack.c.b16 %v1309, %v1297
    %v1874 = vpack.c.b16 %v1310, %v1298
    %v1875 = vpack.c.b16 %v1311, %v1299
    %v1876 = vpack.c.b16 %v1312, %v1300
    %v1877 = vpack.c.b16 %v1313, %v1301
    %v1878 = vpack.c.b16 %v1314, %v1302
    %v1879 = vpack.c.b16 %v1315, %v1303
    %v1880 = vpack.c.b16 %v1316, %v1304
    %v1881 = vpack.c.b16 %v1317, %v1305
    %v1882 = vpack.c.b16 %v1318, %v1306
    %v1883 = vpack.c.b16 %v1319, %v1307
    %v1884 = vpack.c.b16 %v1320, %v1308
    %v1885 = vpack.c.b16 %v1333, %v1321
    %v1886 = vpack.c.b16 %v1334, %v1322
    %v1887 = vpack.c.b16 %v1335, %v1323
    %v1888 = vpack.c.b16 %v1336, %v1324
    %v1889 = vpack.c.b16 %v1337, %v1325
    %v1890 = vpack.c.b16 %v1338, %v1326
    %v1891 = vpack.c.b16 %v1339, %v1327
    %v1892 = vpack.c.b16 %v1340, %v1328
    %v1893 = vpack.c.b16 %v1341, %v1329
    %v1894 = vpack.c.b16 %v1342, %v1330
    %v1895 = vpack.c.b16 %v1343, %v1331
    %v1896 = vpack.c.b16 %v1344, %v1332
    %v1897 = vpack.c.b16 %v1357, %v1345
    %v1898 = vpack.c.b16 %v1358, %v1346
    %v1899 = vpack.c.b16 %v1359, %v1347
    %v1900 = vpack.c.b16 %v1360, %v1348
    %v1901 = vpack.c.b16 %v1361, %v1349
    %v1902 = vpack.c.b16 %v1362, %v1350
    %v1903 = vpack.c.b16 %v1363, %v1351
    %v1904 = vpack.c.b16 %v1364, %v1352
    %v1905 = vpack.c.b16 %v1365, %v1353
    %v1906 = vpack.c.b16 %v1366, %v1354
    %v1907 = vpack.c.b16 %v1367, %v1355
    %v1908 = vpack.c.b16 %v1368, %v1356
    %v1909 = vpack.c.b16 %v1381, %v1369
    %v1910 = vpack.c.b16 %v1382, %v1370
    %v1911 = vpack.c.b16 %v1383, %v1371
    %v1912 = vpack.c.b16 %v1384, %v1372
    %v1913 = vpack.c.b16 %v1385, %v1373
    %v1914 = vpack.c.b16 %v1386, %v1374
    %v1915 = vpack.c.b16 %v1387, %v1375
    %v1916 = vpack.c.b16 %v1388, %v1376
    %v1917 = vpack.c.b16 %v1389, %v1377
    %v1918 = vpack.c.b16 %v1390, %v1378
    %v1919 = vpack.c.b16 %v1391, %v1379
    %v1920 = vpack.c.b16 %v1392, %v1380
    %v1921 = vpack.c.b16 %v1405, %v1393
    %v1922 = vpack.c.b16 %v1406, %v1394
    %v1923 = vpack.c.b16 %v1407, %v1395
    %v1924 = vpack.c.b16 %v1408, %v1396
    %v1925 = vpack.c.b16 %v1409, %v1397
    %v1926 = vpack.c.b16 %v1410, %v1398
    %v1927 = vpack.c.b16 %v1411, %v1399
    %v1928 = vpack.c.b16 %v1412, %v1400
    %v1929 = vpack.c.b16 %v1413, %v1401
    %v1930 = vpack.c.b16 %v1414, %v1402
    %v1931 = vpack.c.b16 %v1415, %v1403
    %v1932 = vpack.c.b16 %v1416, %v1404
    %v1933 = vpack.c.b16 %v1429, %v1417
    %v1934 = vpack.c.b16 %v1430, %v1418
    %v1935 = vpack.c.b16 %v1431, %v1419
    %v1936 = vpack.c.b16 %v1432, %v1420
    %v1937 = vpack.c.b16 %v1433, %v1421
    %v1938 = vpack.c.b16 %v1434, %v1422
    %v1939 = vpack.c.b16 %v1435, %v1423
    %v1940 = vpack.c.b16 %v1436, %v1424
    %v1941 = vpack.c.b16 %v1437, %v1425
    %v1942 = vpack.c.b16 %v1438, %v1426
    %v1943 = vpack.c.b16 %v1439, %v1427
    %v1944 = vpack.c.b16 %v1440, %v1428
    %v1945 = vpack.c.b16 %v1453, %v1441
    %v1946 = vpack.c.b16 %v1454, %v1442
    %v1947 = vpack.c.b16 %v1455, %v1443
    %v1948 = vpack.c.b16 %v1456, %v1444
    %v1949 = vpack.c.b16 %v1457, %v1445
    %v1950 = vpack.c.b16 %v1458, %v1446
    %v1951 = vpack.c.b16 %v1459, %v1447
    %v1952 = vpack.c.b16 %v1460, %v1448
    %v1953 = vpack.c.b16 %v1461, %v1449
    %v1954 = vpack.c.b16 %v1462, %v1450
    %v1955 = vpack.c.b16 %v1463, %v1451
    %v1956 = vpack.c.b16 %v1464, %v1452
    %v1957 = vpack.c.b16 %v1477, %v1465
    %v1958 = vpack.c.b16 %v1478, %v1466
    %v1959 = vpack.c.b16 %v1479, %v1467
    %v1960 = vpack.c.b16 %v1480, %v1468
    %v1961 = vpack.c.b16 %v1481, %v1469
    %v1962 = vpack.c.b16 %v1482, %v1470
    %v1963 = vpack.c.b16 %v1483, %v1471
    %v1964 = vpack.c.b16 %v1484, %v1472
    %v1965 = vpack.c.b16 %v1485, %v1473
    %v1966 = vpack.c.b16 %v1486, %v1474
    %v1967 = vpack.c.b16 %v1487, %v1475
    %v1968 = vpack.c.b16 %v1488, %v1476
    %v1969 = vpack.c.b16 %v1501, %v1489
    %v1970 = vpack.c.b16 %v1502, %v1490
    %v1971 = vpack.c.b16 %v1503, %v1491
    %v1972 = vpack.c.b16 %v1504, %v1492
    %v1973 = vpack.c.b16 %v1505, %v1493
    %v1974 = vpack.c.b16 %v1506, %v1494
    %v1975 = vpack.c.b16 %v1507, %v1495
    %v1976 = vpack.c.b16 %v1508, %v1496
    %v1977 = vpack.c.b16 %v1509, %v1497
    %v1978 = vpack.c.b16 %v1510, %v1498
    %v1979 = vpack.c.b16 %v1511, %v1499
    %v1980 = vpack.c.b16 %v1512, %v1500
    %v1981 = vpack.c.b16 %v1525, %v1513
    %v1982 = vpack.c.b16 %v1526, %v1514
    %v1983 = vpack.c.b16 %v1527, %v1515
    %v1984 = vpack.c.b16 %v1528, %v1516
    %v1985 = vpack.c.b16 %v1529, %v1517
    %v1986 = vpack.c.b16 %v1530, %v1518
    %v1987 = vpack.c.b16 %v1531, %v1519
    %v1988 = vpack.c.b16 %v1532, %v1520
    %v1989 = vpack.c.b16 %v1533, %v1521
    %v1990 = vpack.c.b16 %v1534, %v1522
    %v1991 = vpack.c.b16 %v1535, %v1523
    %v1992 = vpack.c.b16 %v1536, %v1524
    %v1993 = vpack.c.b16 %v1549, %v1537
    %v1994 = vpack.c.b16 %v1550, %v1538
    %v1995 = vpack.c.b16 %v1551, %v1539
    %v1996 = vpack.c.b16 %v1552, %v1540
    %v1997 = vpack.c.b16 %v1553, %v1541
    %v1998 = vpack.c.b16 %v1554, %v1542
    %v1999 = vpack.c.b16 %v1555, %v1543
    %v2000 = vpack.c.b16 %v1556, %v1544
    %v2001 = vpack.c.b16 %v1557, %v1545
    %v2002 = vpack.c.b16 %v1558, %v1546
    %v2003 = vpack.c.b16 %v1559, %v1547
    %v2004 = vpack.c.b16 %v1560, %v1548
    %v2005 = vpack.c.b16 %v1573, %v1561
    %v2006 = vpack.c.b16 %v1574, %v1562
    %v2007 = vpack.c.b16 %v1575, %v1563
    %v2008 = vpack.c.b16 %v1576, %v1564
    %v2009 = vpack.c.b16 %v1577, %v1565
    %v2010 = vpack.c.b16 %v1578, %v1566
    %v2011 = vpack.c.b16 %v1579, %v1567
    %v2012 = vpack.c.b16 %v1580, %v1568
    %v2013 = vpack.c.b16 %v1581, %v1569
    %v2014 = vpack.c.b16 %v1582, %v1570
    %v2015 = vpack.c.b16 %v1583, %v1571
    %v2016 = vpack.c.b16 %v1584, %v1572
    %v2017 = vpack.c.b16 %v1597, %v1585
    %v2018 = vpack.c.b16 %v1598, %v1586
    %v2019 = vpack.c.b16 %v1599, %v1587
    %v2020 = vpack.c.b16 %v1600, %v1588
    %v2021 = vpack.c.b16 %v1601, %v1589
    %v2022 = vpack.c.b16 %v1602, %v1590
    %v2023 = vpack.c.b16 %v1603, %v1591
    %v2024 = vpack.c.b16 %v1604, %v1592
    %v2025 = vpack.c.b16 %v1605, %v1593
    %v2026 = vpack.c.b16 %v1606, %v1594
    %v2027 = vpack.c.b16 %v1607, %v1595
    %v2028 = vpack.c.b16 %v1608, %v1596
    %v2029 = vpack.c.b16 %v1621, %v1609
    %v2030 = vpack.c.b16 %v1622, %v1610
    %v2031 = vpack.c.b16 %v1623, %v1611
    %v2032 = vpack.c.b16 %v1624, %v1612
    %v2033 = vpack.c.b16 %v1625, %v1613
    %v2034 = vpack.c.b16 %v1626, %v1614
    %v2035 = vpack.c.b16 %v1627, %v1615
    %v2036 = vpack.c.b16 %v1628, %v1616
    %v2037 = vpack.c.b16 %v1629, %v1617
    %v2038 = vpack.c.b16 %v1630, %v1618
    %v2039 = vpack.c.b16 %v1631, %v1619
    %v2040 = vpack.c.b16 %v1632, %v1620
    %v2041 = vpack.c.b16 %v1645, %v1633
    %v2042 = vpack.c.b16 %v1646, %v1634
    %v2043 = vpack.c.b16 %v1647, %v1635
    %v2044 = vpack.c.b16 %v1648, %v1636
    %v2045 = vpack.c.b16 %v1649, %v1637
    %v2046 = vpack.c.b16 %v1650, %v1638
    %v2047 = vpack.c.b16 %v1651, %v1639
    %v2048 = vpack.c.b16 %v1652, %v1640
    %v2049 = vpack.c.b16 %v1653, %v1641
    %v2050 = vpack.c.b16 %v1654, %v1642
    %v2051 = vpack.c.b16 %v1655, %v1643
    %v2052 = vpack.c.b16 %v1656, %v1644
    %v2053 = vpack.c.b16 %v1669, %v1657
    %v2054 = vpack.c.b16 %v1670, %v1658
    %v2055 = vpack.c.b16 %v1671, %v1659
    %v2056 = vpack.c.b16 %v1672, %v1660
    %v2057 = vpack.c.b16 %v1673, %v1661
    %v2058 = vpack.c.b16 %v1674, %v1662
    %v2059 = vpack.c.b16 %v1675, %v1663
    %v2060 = vpack.c.b16 %v1676, %v1664
    %v2061 = vpack.c.b16 %v1677, %v1665
    %v2062 = vpack.c.b16 %v1678, %v1666
    %v2063 = vpack.c.b16 %v1679, %v1667
    %v2064 = vpack.c.b16 %v1680, %v1668
    %2449 = vmatprep.subr.bf16.mxu0 %v1682
    %2450 = vmatpush1.bf16.msra.mxu0 %v1681
    %2451 = vmatprep.subr.bf16.mxu0 %v1694
    %2452 = vmatpush1.bf16.msra.mxu0 %v1693
    %2453 = vmatprep.subr.bf16.mxu0 %v1706
    %2454 = vmatpush1.bf16.msra.mxu0 %v1705
    %2455 = vmatprep.subr.bf16.mxu0 %v1718
    %2456 = vmatpush1.bf16.msra.mxu0 %v1717
    %2457 = vmatprep.subr.bf16.mxu0 %v1730
    %2458 = vmatpush1.bf16.msra.mxu0 %v1729
    %2459 = vmatprep.subr.bf16.mxu0 %v1742
    %2460 = vmatpush1.bf16.msra.mxu0 %v1741
    %2461 = vmatprep.subr.bf16.mxu0 %v1754
    %2462 = vmatpush1.bf16.msra.mxu0 %v1753
    %2463 = vmatprep.subr.bf16.mxu0 %v1766
    %2464 = vmatpush1.bf16.msra.mxu0 %v1765
    %2465 = vmatprep.subr.bf16.mxu0 %v1778
    %2466 = vmatpush1.bf16.msra.mxu0 %v1777
    %2467 = vmatprep.subr.bf16.mxu0 %v1790
    %2468 = vmatpush1.bf16.msra.mxu0 %v1789
    %2469 = vmatprep.subr.bf16.mxu0 %v1802
    %2470 = vmatpush1.bf16.msra.mxu0 %v1801
    %2471 = vmatprep.subr.bf16.mxu0 %v1814
    %2472 = vmatpush1.bf16.msra.mxu0 %v1813
    %2473 = vmatprep.subr.bf16.mxu0 %v1826
    %2474 = vmatpush1.bf16.msra.mxu0 %v1825
    %2475 = vmatprep.subr.bf16.mxu0 %v1838
    %2476 = vmatpush1.bf16.msra.mxu0 %v1837
    %2477 = vmatprep.subr.bf16.mxu0 %v1850
    %2478 = vmatpush1.bf16.msra.mxu0 %v1849
    %2479 = vmatprep.subr.bf16.mxu0 %v1862
    %2480 = vmatpush1.bf16.msra.mxu0 %v1861
    %2481 = vmatprep.mubr.bf16.mxu0 %v523
    %2482 = vmatmul.mubr.bf16.gmra.mrb[0].mxu0 %v515
    %v2483 = vpop.f32.mrb[0].mxu0
    %v2484 = vadd.f32 %v448, %v2483
    %v2485 = vpop.f32.mrb[0].mxu0
    %v2486 = vadd.f32 %v452, %v2485
    %v2487 = vpop.f32.mrb[0].mxu0
    %v2488 = vpop.f32.mrb[0].mxu0
    %2489 = vdwg.mxu0
    %2490 = vmatprep.subr.bf16.mxu0 %v1874
    %2491 = vmatpush1.bf16.msra.mxu0 %v1873
    %2492 = vmatprep.subr.bf16.mxu0 %v1886
    %2493 = vmatpush1.bf16.msra.mxu0 %v1885
    %2494 = vmatprep.subr.bf16.mxu0 %v1898
    %2495 = vmatpush1.bf16.msra.mxu0 %v1897
    %2496 = vmatprep.subr.bf16.mxu0 %v1910
    %2497 = vmatpush1.bf16.msra.mxu0 %v1909
    %2498 = vmatprep.subr.bf16.mxu0 %v1922
    %2499 = vmatpush1.bf16.msra.mxu0 %v1921
    %2500 = vmatprep.subr.bf16.mxu0 %v1934
    %2501 = vmatpush1.bf16.msra.mxu0 %v1933
    %2502 = vmatprep.subr.bf16.mxu0 %v1946
    %2503 = vmatpush1.bf16.msra.mxu0 %v1945
    %2504 = vmatprep.subr.bf16.mxu0 %v1958
    %2505 = vmatpush1.bf16.msra.mxu0 %v1957
    %2506 = vmatprep.subr.bf16.mxu0 %v1970
    %2507 = vmatpush1.bf16.msra.mxu0 %v1969
    %2508 = vmatprep.subr.bf16.mxu0 %v1982
    %2509 = vmatpush1.bf16.msra.mxu0 %v1981
    %2510 = vmatprep.subr.bf16.mxu0 %v1994
    %2511 = vmatpush1.bf16.msra.mxu0 %v1993
    %2512 = vmatprep.subr.bf16.mxu0 %v2006
    %2513 = vmatpush1.bf16.msra.mxu0 %v2005
    %2514 = vmatprep.subr.bf16.mxu0 %v2018
    %2515 = vmatpush1.bf16.msra.mxu0 %v2017
    %2516 = vmatprep.subr.bf16.mxu0 %v2030
    %2517 = vmatpush1.bf16.msra.mxu0 %v2029
    %2518 = vmatprep.subr.bf16.mxu0 %v2042
    %2519 = vmatpush1.bf16.msra.mxu0 %v2041
    %2520 = vmatprep.subr.bf16.mxu0 %v2054
    %2521 = vmatpush1.bf16.msra.mxu0 %v2053
    %2522 = vmatprep.mubr.bf16.mxu0 %v524
    %2523 = vmatmul.mubr.bf16.gmra.mrb[0].mxu0 %v522
    %v2524 = vpop.f32.mrb[0].mxu0
    %v2525 = vadd.f32 %v2484, %v2524
    %v2526 = vpop.f32.mrb[0].mxu0
    %v2527 = vadd.f32 %v2486, %v2526
    %v2528 = vpop.f32.mrb[0].mxu0
    %v2529 = vpop.f32.mrb[0].mxu0
    %2530 = vdwg.mxu0
    %2531 = vmatprep.subr.bf16.mxu0 %v1684
    %2532 = vmatpush1.bf16.msra.mxu0 %v1683
    %2533 = vmatprep.subr.bf16.mxu0 %v1696
    %2534 = vmatpush1.bf16.msra.mxu0 %v1695
    %2535 = vmatprep.subr.bf16.mxu0 %v1708
    %2536 = vmatpush1.bf16.msra.mxu0 %v1707
    %2537 = vmatprep.subr.bf16.mxu0 %v1720
    %2538 = vmatpush1.bf16.msra.mxu0 %v1719
    %2539 = vmatprep.subr.bf16.mxu0 %v1732
    %2540 = vmatpush1.bf16.msra.mxu0 %v1731
    %2541 = vmatprep.subr.bf16.mxu0 %v1744
    %2542 = vmatpush1.bf16.msra.mxu0 %v1743
    %2543 = vmatprep.subr.bf16.mxu0 %v1756
    %2544 = vmatpush1.bf16.msra.mxu0 %v1755
    %2545 = vmatprep.subr.bf16.mxu0 %v1768
    %2546 = vmatpush1.bf16.msra.mxu0 %v1767
    %2547 = vmatprep.subr.bf16.mxu0 %v1780
    %2548 = vmatpush1.bf16.msra.mxu0 %v1779
    %2549 = vmatprep.subr.bf16.mxu0 %v1792
    %2550 = vmatpush1.bf16.msra.mxu0 %v1791
    %2551 = vmatprep.subr.bf16.mxu0 %v1804
    %2552 = vmatpush1.bf16.msra.mxu0 %v1803
    %2553 = vmatprep.subr.bf16.mxu0 %v1816
    %2554 = vmatpush1.bf16.msra.mxu0 %v1815
    %2555 = vmatprep.subr.bf16.mxu0 %v1828
    %2556 = vmatpush1.bf16.msra.mxu0 %v1827
    %2557 = vmatprep.subr.bf16.mxu0 %v1840
    %2558 = vmatpush1.bf16.msra.mxu0 %v1839
    %2559 = vmatprep.subr.bf16.mxu0 %v1852
    %2560 = vmatpush1.bf16.msra.mxu0 %v1851
    %2561 = vmatprep.subr.bf16.mxu0 %v1864
    %2562 = vmatpush1.bf16.msra.mxu0 %v1863
    %2563 = vmatprep.mubr.bf16.mxu0 %v523
    %2564 = vmatmul.mubr.bf16.gmra.mrb[0].mxu0 %v515
    %v2565 = vpop.f32.mrb[0].mxu0
    %v2566 = vadd.f32 %v456, %v2565
    %v2567 = vpop.f32.mrb[0].mxu0
    %v2568 = vadd.f32 %v460, %v2567
    %v2569 = vpop.f32.mrb[0].mxu0
    %v2570 = vpop.f32.mrb[0].mxu0
    %2571 = vdwg.mxu0
    %2572 = vmatprep.subr.bf16.mxu0 %v1876
    %2573 = vmatpush1.bf16.msra.mxu0 %v1875
    %2574 = vmatprep.subr.bf16.mxu0 %v1888
    %2575 = vmatpush1.bf16.msra.mxu0 %v1887
    %2576 = vmatprep.subr.bf16.mxu0 %v1900
    %2577 = vmatpush1.bf16.msra.mxu0 %v1899
    %2578 = vmatprep.subr.bf16.mxu0 %v1912
    %2579 = vmatpush1.bf16.msra.mxu0 %v1911
    %2580 = vmatprep.subr.bf16.mxu0 %v1924
    %2581 = vmatpush1.bf16.msra.mxu0 %v1923
    %2582 = vmatprep.subr.bf16.mxu0 %v1936
    %2583 = vmatpush1.bf16.msra.mxu0 %v1935
    %2584 = vmatprep.subr.bf16.mxu0 %v1948
    %2585 = vmatpush1.bf16.msra.mxu0 %v1947
    %2586 = vmatprep.subr.bf16.mxu0 %v1960
    %2587 = vmatpush1.bf16.msra.mxu0 %v1959
    %2588 = vmatprep.subr.bf16.mxu0 %v1972
    %2589 = vmatpush1.bf16.msra.mxu0 %v1971
    %2590 = vmatprep.subr.bf16.mxu0 %v1984
    %2591 = vmatpush1.bf16.msra.mxu0 %v1983
    %2592 = vmatprep.subr.bf16.mxu0 %v1996
    %2593 = vmatpush1.bf16.msra.mxu0 %v1995
    %2594 = vmatprep.subr.bf16.mxu0 %v2008
    %2595 = vmatpush1.bf16.msra.mxu0 %v2007
    %2596 = vmatprep.subr.bf16.mxu0 %v2020
    %2597 = vmatpush1.bf16.msra.mxu0 %v2019
    %2598 = vmatprep.subr.bf16.mxu0 %v2032
    %2599 = vmatpush1.bf16.msra.mxu0 %v2031
    %2600 = vmatprep.subr.bf16.mxu0 %v2044
    %2601 = vmatpush1.bf16.msra.mxu0 %v2043
    %2602 = vmatprep.subr.bf16.mxu0 %v2056
    %2603 = vmatpush1.bf16.msra.mxu0 %v2055
    %2604 = vmatprep.mubr.bf16.mxu0 %v524
    %2605 = vmatmul.mubr.bf16.gmra.mrb[0].mxu0 %v522
    %v2606 = vpop.f32.mrb[0].mxu0
    %v2607 = vadd.f32 %v2566, %v2606
    %v2608 = vpop.f32.mrb[0].mxu0
    %v2609 = vadd.f32 %v2568, %v2608
    %v2610 = vpop.f32.mrb[0].mxu0
    %v2611 = vpop.f32.mrb[0].mxu0
    %2612 = vdwg.mxu0
    %2613 = vmatprep.subr.bf16.mxu0 %v1686
    %2614 = vmatpush1.bf16.msra.mxu0 %v1685
    %2615 = vmatprep.subr.bf16.mxu0 %v1698
    %2616 = vmatpush1.bf16.msra.mxu0 %v1697
    %2617 = vmatprep.subr.bf16.mxu0 %v1710
    %2618 = vmatpush1.bf16.msra.mxu0 %v1709
    %2619 = vmatprep.subr.bf16.mxu0 %v1722
    %2620 = vmatpush1.bf16.msra.mxu0 %v1721
    %2621 = vmatprep.subr.bf16.mxu0 %v1734
    %2622 = vmatpush1.bf16.msra.mxu0 %v1733
    %2623 = vmatprep.subr.bf16.mxu0 %v1746
    %2624 = vmatpush1.bf16.msra.mxu0 %v1745
    %2625 = vmatprep.subr.bf16.mxu0 %v1758
    %2626 = vmatpush1.bf16.msra.mxu0 %v1757
    %2627 = vmatprep.subr.bf16.mxu0 %v1770
    %2628 = vmatpush1.bf16.msra.mxu0 %v1769
    %2629 = vmatprep.subr.bf16.mxu0 %v1782
    %2630 = vmatpush1.bf16.msra.mxu0 %v1781
    %2631 = vmatprep.subr.bf16.mxu0 %v1794
    %2632 = vmatpush1.bf16.msra.mxu0 %v1793
    %2633 = vmatprep.subr.bf16.mxu0 %v1806
    %2634 = vmatpush1.bf16.msra.mxu0 %v1805
    %2635 = vmatprep.subr.bf16.mxu0 %v1818
    %2636 = vmatpush1.bf16.msra.mxu0 %v1817
    %2637 = vmatprep.subr.bf16.mxu0 %v1830
    %2638 = vmatpush1.bf16.msra.mxu0 %v1829
    %2639 = vmatprep.subr.bf16.mxu0 %v1842
    %2640 = vmatpush1.bf16.msra.mxu0 %v1841
    %2641 = vmatprep.subr.bf16.mxu0 %v1854
    %2642 = vmatpush1.bf16.msra.mxu0 %v1853
    %2643 = vmatprep.subr.bf16.mxu0 %v1866
    %2644 = vmatpush1.bf16.msra.mxu0 %v1865
    %2645 = vmatprep.mubr.bf16.mxu0 %v523
    %2646 = vmatmul.mubr.bf16.gmra.mrb[0].mxu0 %v515
    %v2647 = vpop.f32.mrb[0].mxu0
    %v2648 = vadd.f32 %v464, %v2647
    %v2649 = vpop.f32.mrb[0].mxu0
    %v2650 = vadd.f32 %v468, %v2649
    %v2651 = vpop.f32.mrb[0].mxu0
    %v2652 = vpop.f32.mrb[0].mxu0
    %2653 = vdwg.mxu0
    %2654 = vmatprep.subr.bf16.mxu0 %v1878
    %2655 = vmatpush1.bf16.msra.mxu0 %v1877
    %2656 = vmatprep.subr.bf16.mxu0 %v1890
    %2657 = vmatpush1.bf16.msra.mxu0 %v1889
    %2658 = vmatprep.subr.bf16.mxu0 %v1902
    %2659 = vmatpush1.bf16.msra.mxu0 %v1901
    %2660 = vmatprep.subr.bf16.mxu0 %v1914
    %2661 = vmatpush1.bf16.msra.mxu0 %v1913
    %2662 = vmatprep.subr.bf16.mxu0 %v1926
    %2663 = vmatpush1.bf16.msra.mxu0 %v1925
    %2664 = vmatprep.subr.bf16.mxu0 %v1938
    %2665 = vmatpush1.bf16.msra.mxu0 %v1937
    %2666 = vmatprep.subr.bf16.mxu0 %v1950
    %2667 = vmatpush1.bf16.msra.mxu0 %v1949
    %2668 = vmatprep.subr.bf16.mxu0 %v1962
    %2669 = vmatpush1.bf16.msra.mxu0 %v1961
    %2670 = vmatprep.subr.bf16.mxu0 %v1974
    %2671 = vmatpush1.bf16.msra.mxu0 %v1973
    %2672 = vmatprep.subr.bf16.mxu0 %v1986
    %2673 = vmatpush1.bf16.msra.mxu0 %v1985
    %2674 = vmatprep.subr.bf16.mxu0 %v1998
    %2675 = vmatpush1.bf16.msra.mxu0 %v1997
    %2676 = vmatprep.subr.bf16.mxu0 %v2010
    %2677 = vmatpush1.bf16.msra.mxu0 %v2009
    %2678 = vmatprep.subr.bf16.mxu0 %v2022
    %2679 = vmatpush1.bf16.msra.mxu0 %v2021
    %2680 = vmatprep.subr.bf16.mxu0 %v2034
    %2681 = vmatpush1.bf16.msra.mxu0 %v2033
    %2682 = vmatprep.subr.bf16.mxu0 %v2046
    %2683 = vmatpush1.bf16.msra.mxu0 %v2045
    %2684 = vmatprep.subr.bf16.mxu0 %v2058
    %2685 = vmatpush1.bf16.msra.mxu0 %v2057
    %2686 = vmatprep.mubr.bf16.mxu0 %v524
    %2687 = vmatmul.mubr.bf16.gmra.mrb[0].mxu0 %v522
    %v2688 = vpop.f32.mrb[0].mxu0
    %v2689 = vadd.f32 %v2648, %v2688
    %v2690 = vpop.f32.mrb[0].mxu0
    %v2691 = vadd.f32 %v2650, %v2690
    %v2692 = vpop.f32.mrb[0].mxu0
    %v2693 = vpop.f32.mrb[0].mxu0
    %2694 = vdwg.mxu0
    %2695 = vmatprep.subr.bf16.mxu0 %v1688
    %2696 = vmatpush1.bf16.msra.mxu0 %v1687
    %2697 = vmatprep.subr.bf16.mxu0 %v1700
    %2698 = vmatpush1.bf16.msra.mxu0 %v1699
    %2699 = vmatprep.subr.bf16.mxu0 %v1712
    %2700 = vmatpush1.bf16.msra.mxu0 %v1711
    %2701 = vmatprep.subr.bf16.mxu0 %v1724
    %2702 = vmatpush1.bf16.msra.mxu0 %v1723
    %2703 = vmatprep.subr.bf16.mxu0 %v1736
    %2704 = vmatpush1.bf16.msra.mxu0 %v1735
    %2705 = vmatprep.subr.bf16.mxu0 %v1748
    %2706 = vmatpush1.bf16.msra.mxu0 %v1747
    %2707 = vmatprep.subr.bf16.mxu0 %v1760
    %2708 = vmatpush1.bf16.msra.mxu0 %v1759
    %2709 = vmatprep.subr.bf16.mxu0 %v1772
    %2710 = vmatpush1.bf16.msra.mxu0 %v1771
    %2711 = vmatprep.subr.bf16.mxu0 %v1784
    %2712 = vmatpush1.bf16.msra.mxu0 %v1783
    %2713 = vmatprep.subr.bf16.mxu0 %v1796
    %2714 = vmatpush1.bf16.msra.mxu0 %v1795
    %2715 = vmatprep.subr.bf16.mxu0 %v1808
    %2716 = vmatpush1.bf16.msra.mxu0 %v1807
    %2717 = vmatprep.subr.bf16.mxu0 %v1820
    %2718 = vmatpush1.bf16.msra.mxu0 %v1819
    %2719 = vmatprep.subr.bf16.mxu0 %v1832
    %2720 = vmatpush1.bf16.msra.mxu0 %v1831
    %2721 = vmatprep.subr.bf16.mxu0 %v1844
    %2722 = vmatpush1.bf16.msra.mxu0 %v1843
    %2723 = vmatprep.subr.bf16.mxu0 %v1856
    %2724 = vmatpush1.bf16.msra.mxu0 %v1855
    %2725 = vmatprep.subr.bf16.mxu0 %v1868
    %2726 = vmatpush1.bf16.msra.mxu0 %v1867
    %2727 = vmatprep.mubr.bf16.mxu0 %v523
    %2728 = vmatmul.mubr.bf16.gmra.mrb[0].mxu0 %v515
    %v2729 = vpop.f32.mrb[0].mxu0
    %v2730 = vadd.f32 %v472, %v2729
    %v2731 = vpop.f32.mrb[0].mxu0
    %v2732 = vadd.f32 %v476, %v2731
    %v2733 = vpop.f32.mrb[0].mxu0
    %v2734 = vpop.f32.mrb[0].mxu0
    %2735 = vdwg.mxu0
    %2736 = vmatprep.subr.bf16.mxu0 %v1880
    %2737 = vmatpush1.bf16.msra.mxu0 %v1879
    %2738 = vmatprep.subr.bf16.mxu0 %v1892
    %2739 = vmatpush1.bf16.msra.mxu0 %v1891
    %2740 = vmatprep.subr.bf16.mxu0 %v1904
    %2741 = vmatpush1.bf16.msra.mxu0 %v1903
    %2742 = vmatprep.subr.bf16.mxu0 %v1916
    %2743 = vmatpush1.bf16.msra.mxu0 %v1915
    %2744 = vmatprep.subr.bf16.mxu0 %v1928
    %2745 = vmatpush1.bf16.msra.mxu0 %v1927
    %2746 = vmatprep.subr.bf16.mxu0 %v1940
    %2747 = vmatpush1.bf16.msra.mxu0 %v1939
    %2748 = vmatprep.subr.bf16.mxu0 %v1952
    %2749 = vmatpush1.bf16.msra.mxu0 %v1951
    %2750 = vmatprep.subr.bf16.mxu0 %v1964
    %2751 = vmatpush1.bf16.msra.mxu0 %v1963
    %2752 = vmatprep.subr.bf16.mxu0 %v1976
    %2753 = vmatpush1.bf16.msra.mxu0 %v1975
    %2754 = vmatprep.subr.bf16.mxu0 %v1988
    %2755 = vmatpush1.bf16.msra.mxu0 %v1987
    %2756 = vmatprep.subr.bf16.mxu0 %v2000
    %2757 = vmatpush1.bf16.msra.mxu0 %v1999
    %2758 = vmatprep.subr.bf16.mxu0 %v2012
    %2759 = vmatpush1.bf16.msra.mxu0 %v2011
    %2760 = vmatprep.subr.bf16.mxu0 %v2024
    %2761 = vmatpush1.bf16.msra.mxu0 %v2023
    %2762 = vmatprep.subr.bf16.mxu0 %v2036
    %2763 = vmatpush1.bf16.msra.mxu0 %v2035
    %2764 = vmatprep.subr.bf16.mxu0 %v2048
    %2765 = vmatpush1.bf16.msra.mxu0 %v2047
    %2766 = vmatprep.subr.bf16.mxu0 %v2060
    %2767 = vmatpush1.bf16.msra.mxu0 %v2059
    %2768 = vmatprep.mubr.bf16.mxu0 %v524
    %2769 = vmatmul.mubr.bf16.gmra.mrb[0].mxu0 %v522
    %v2770 = vpop.f32.mrb[0].mxu0
    %v2771 = vadd.f32 %v2730, %v2770
    %v2772 = vpop.f32.mrb[0].mxu0
    %v2773 = vadd.f32 %v2732, %v2772
    %v2774 = vpop.f32.mrb[0].mxu0
    %v2775 = vpop.f32.mrb[0].mxu0
    %2776 = vdwg.mxu0
    %2777 = vmatprep.subr.bf16.mxu0 %v1690
    %2778 = vmatpush1.bf16.msra.mxu0 %v1689
    %2779 = vmatprep.subr.bf16.mxu0 %v1702
    %2780 = vmatpush1.bf16.msra.mxu0 %v1701
    %2781 = vmatprep.subr.bf16.mxu0 %v1714
    %2782 = vmatpush1.bf16.msra.mxu0 %v1713
    %2783 = vmatprep.subr.bf16.mxu0 %v1726
    %2784 = vmatpush1.bf16.msra.mxu0 %v1725
    %2785 = vmatprep.subr.bf16.mxu0 %v1738
    %2786 = vmatpush1.bf16.msra.mxu0 %v1737
    %2787 = vmatprep.subr.bf16.mxu0 %v1750
    %2788 = vmatpush1.bf16.msra.mxu0 %v1749
    %2789 = vmatprep.subr.bf16.mxu0 %v1762
    %2790 = vmatpush1.bf16.msra.mxu0 %v1761
    %2791 = vmatprep.subr.bf16.mxu0 %v1774
    %2792 = vmatpush1.bf16.msra.mxu0 %v1773
    %2793 = vmatprep.subr.bf16.mxu0 %v1786
    %2794 = vmatpush1.bf16.msra.mxu0 %v1785
    %2795 = vmatprep.subr.bf16.mxu0 %v1798
    %2796 = vmatpush1.bf16.msra.mxu0 %v1797
    %2797 = vmatprep.subr.bf16.mxu0 %v1810
    %2798 = vmatpush1.bf16.msra.mxu0 %v1809
    %2799 = vmatprep.subr.bf16.mxu0 %v1822
    %2800 = vmatpush1.bf16.msra.mxu0 %v1821
    %2801 = vmatprep.subr.bf16.mxu0 %v1834
    %2802 = vmatpush1.bf16.msra.mxu0 %v1833
    %2803 = vmatprep.subr.bf16.mxu0 %v1846
    %2804 = vmatpush1.bf16.msra.mxu0 %v1845
    %2805 = vmatprep.subr.bf16.mxu0 %v1858
    %2806 = vmatpush1.bf16.msra.mxu0 %v1857
    %2807 = vmatprep.subr.bf16.mxu0 %v1870
    %2808 = vmatpush1.bf16.msra.mxu0 %v1869
    %2809 = vmatprep.mubr.bf16.mxu0 %v523
    %2810 = vmatmul.mubr.bf16.gmra.mrb[0].mxu0 %v515
    %v2811 = vpop.f32.mrb[0].mxu0
    %v2812 = vadd.f32 %v480, %v2811
    %v2813 = vpop.f32.mrb[0].mxu0
    %v2814 = vadd.f32 %v484, %v2813
    %v2815 = vpop.f32.mrb[0].mxu0
    %v2816 = vpop.f32.mrb[0].mxu0
    %2817 = vdwg.mxu0
    %2818 = vmatprep.subr.bf16.mxu0 %v1882
    %2819 = vmatpush1.bf16.msra.mxu0 %v1881
    %2820 = vmatprep.subr.bf16.mxu0 %v1894
    %2821 = vmatpush1.bf16.msra.mxu0 %v1893
    %2822 = vmatprep.subr.bf16.mxu0 %v1906
    %2823 = vmatpush1.bf16.msra.mxu0 %v1905
    %2824 = vmatprep.subr.bf16.mxu0 %v1918
    %2825 = vmatpush1.bf16.msra.mxu0 %v1917
    %2826 = vmatprep.subr.bf16.mxu0 %v1930
    %2827 = vmatpush1.bf16.msra.mxu0 %v1929
    %2828 = vmatprep.subr.bf16.mxu0 %v1942
    %2829 = vmatpush1.bf16.msra.mxu0 %v1941
    %2830 = vmatprep.subr.bf16.mxu0 %v1954
    %2831 = vmatpush1.bf16.msra.mxu0 %v1953
    %2832 = vmatprep.subr.bf16.mxu0 %v1966
    %2833 = vmatpush1.bf16.msra.mxu0 %v1965
    %2834 = vmatprep.subr.bf16.mxu0 %v1978
    %2835 = vmatpush1.bf16.msra.mxu0 %v1977
    %2836 = vmatprep.subr.bf16.mxu0 %v1990
    %2837 = vmatpush1.bf16.msra.mxu0 %v1989
    %2838 = vmatprep.subr.bf16.mxu0 %v2002
    %2839 = vmatpush1.bf16.msra.mxu0 %v2001
    %2840 = vmatprep.subr.bf16.mxu0 %v2014
    %2841 = vmatpush1.bf16.msra.mxu0 %v2013
    %2842 = vmatprep.subr.bf16.mxu0 %v2026
    %2843 = vmatpush1.bf16.msra.mxu0 %v2025
    %2844 = vmatprep.subr.bf16.mxu0 %v2038
    %2845 = vmatpush1.bf16.msra.mxu0 %v2037
    %2846 = vmatprep.subr.bf16.mxu0 %v2050
    %2847 = vmatpush1.bf16.msra.mxu0 %v2049
    %2848 = vmatprep.subr.bf16.mxu0 %v2062
    %2849 = vmatpush1.bf16.msra.mxu0 %v2061
    %2850 = vmatprep.mubr.bf16.mxu0 %v524
    %2851 = vmatmul.mubr.bf16.gmra.mrb[0].mxu0 %v522
    %v2852 = vpop.f32.mrb[0].mxu0
    %v2853 = vadd.f32 %v2812, %v2852
    %v2854 = vpop.f32.mrb[0].mxu0
    %v2855 = vadd.f32 %v2814, %v2854
    %v2856 = vpop.f32.mrb[0].mxu0
    %v2857 = vpop.f32.mrb[0].mxu0
    %2858 = vdwg.mxu0
    %2859 = vmatprep.subr.bf16.mxu0 %v1692
    %2860 = vmatpush1.bf16.msra.mxu0 %v1691
    %2861 = vmatprep.subr.bf16.mxu0 %v1704
    %2862 = vmatpush1.bf16.msra.mxu0 %v1703
    %2863 = vmatprep.subr.bf16.mxu0 %v1716
    %2864 = vmatpush1.bf16.msra.mxu0 %v1715
    %2865 = vmatprep.subr.bf16.mxu0 %v1728
    %2866 = vmatpush1.bf16.msra.mxu0 %v1727
    %2867 = vmatprep.subr.bf16.mxu0 %v1740
    %2868 = vmatpush1.bf16.msra.mxu0 %v1739
    %2869 = vmatprep.subr.bf16.mxu0 %v1752
    %2870 = vmatpush1.bf16.msra.mxu0 %v1751
    %2871 = vmatprep.subr.bf16.mxu0 %v1764
    %2872 = vmatpush1.bf16.msra.mxu0 %v1763
    %2873 = vmatprep.subr.bf16.mxu0 %v1776
    %2874 = vmatpush1.bf16.msra.mxu0 %v1775
    %2875 = vmatprep.subr.bf16.mxu0 %v1788
    %2876 = vmatpush1.bf16.msra.mxu0 %v1787
    %2877 = vmatprep.subr.bf16.mxu0 %v1800
    %2878 = vmatpush1.bf16.msra.mxu0 %v1799
    %2879 = vmatprep.subr.bf16.mxu0 %v1812
    %2880 = vmatpush1.bf16.msra.mxu0 %v1811
    %2881 = vmatprep.subr.bf16.mxu0 %v1824
    %2882 = vmatpush1.bf16.msra.mxu0 %v1823
    %2883 = vmatprep.subr.bf16.mxu0 %v1836
    %2884 = vmatpush1.bf16.msra.mxu0 %v1835
    %2885 = vmatprep.subr.bf16.mxu0 %v1848
    %2886 = vmatpush1.bf16.msra.mxu0 %v1847
    %2887 = vmatprep.subr.bf16.mxu0 %v1860
    %2888 = vmatpush1.bf16.msra.mxu0 %v1859
    %2889 = vmatprep.subr.bf16.mxu0 %v1872
    %2890 = vmatpush1.bf16.msra.mxu0 %v1871
    %2891 = vmatprep.mubr.bf16.mxu0 %v523
    %2892 = vmatmul.mubr.bf16.gmra.mrb[0].mxu0 %v515
    %v2893 = vpop.f32.mrb[0].mxu0
    %v2894 = vadd.f32 %v488, %v2893
    %v2895 = vpop.f32.mrb[0].mxu0
    %v2896 = vadd.f32 %v492, %v2895
    %v2897 = vpop.f32.mrb[0].mxu0
    %v2898 = vpop.f32.mrb[0].mxu0
    %2899 = vdwg.mxu0
    %2900 = vmatprep.subr.bf16.mxu0 %v1884
    %2901 = vmatpush1.bf16.msra.mxu0 %v1883
    %2902 = vmatprep.subr.bf16.mxu0 %v1896
    %2903 = vmatpush1.bf16.msra.mxu0 %v1895
    %2904 = vmatprep.subr.bf16.mxu0 %v1908
    %2905 = vmatpush1.bf16.msra.mxu0 %v1907
    %2906 = vmatprep.subr.bf16.mxu0 %v1920
    %2907 = vmatpush1.bf16.msra.mxu0 %v1919
    %2908 = vmatprep.subr.bf16.mxu0 %v1932
    %2909 = vmatpush1.bf16.msra.mxu0 %v1931
    %2910 = vmatprep.subr.bf16.mxu0 %v1944
    %2911 = vmatpush1.bf16.msra.mxu0 %v1943
    %2912 = vmatprep.subr.bf16.mxu0 %v1956
    %2913 = vmatpush1.bf16.msra.mxu0 %v1955
    %2914 = vmatprep.subr.bf16.mxu0 %v1968
    %2915 = vmatpush1.bf16.msra.mxu0 %v1967
    %2916 = vmatprep.subr.bf16.mxu0 %v1980
    %2917 = vmatpush1.bf16.msra.mxu0 %v1979
    %2918 = vmatprep.subr.bf16.mxu0 %v1992
    %2919 = vmatpush1.bf16.msra.mxu0 %v1991
    %2920 = vmatprep.subr.bf16.mxu0 %v2004
    %2921 = vmatpush1.bf16.msra.mxu0 %v2003
    %2922 = vmatprep.subr.bf16.mxu0 %v2016
    %2923 = vmatpush1.bf16.msra.mxu0 %v2015
    %2924 = vmatprep.subr.bf16.mxu0 %v2028
    %2925 = vmatpush1.bf16.msra.mxu0 %v2027
    %2926 = vmatprep.subr.bf16.mxu0 %v2040
    %2927 = vmatpush1.bf16.msra.mxu0 %v2039
    %2928 = vmatprep.subr.bf16.mxu0 %v2052
    %2929 = vmatpush1.bf16.msra.mxu0 %v2051
    %2930 = vmatprep.subr.bf16.mxu0 %v2064
    %2931 = vmatpush1.bf16.msra.mxu0 %v2063
    %2932 = vmatprep.mubr.bf16.mxu0 %v524
    %2933 = vmatmul.mubr.bf16.gmra.mrb[0].mxu0 %v522
    %v2934 = vpop.f32.mrb[0].mxu0
    %v2935 = vadd.f32 %v2894, %v2934
    %v2936 = vpop.f32.mrb[0].mxu0
    %v2937 = vadd.f32 %v2896, %v2936
    %v2938 = vpop.f32.mrb[0].mxu0
    %v2939 = vpop.f32.mrb[0].mxu0
    %2940 = vdwg.mxu0
    %v2945 = vcombine.low %v2525, %v2527
    %v2946 = vcombine.high %v2525, %v2527
    %v2947 = vcombine.low %v2607, %v2609
    %v2948 = vcombine.high %v2607, %v2609
    %v2953 = vcombine.high %v2945, %v2945
    %v2954 = vcombine.high %v2947, %v2947
    %v2955 = vcombine.high %v2946, %v2946
    %v2956 = vcombine.high %v2948, %v2948
    %v2961 = vpack.c.bf16 %v2945, %v2945
    %v2962 = vpack.c.bf16 %v2953, %v2953
    %v2963 = vpack.c.bf16 %v2947, %v2947
    %v2964 = vpack.c.bf16 %v2954, %v2954
    %v2965 = vpack.c.bf16 %v2946, %v2946
    %v2966 = vpack.c.bf16 %v2955, %v2955
    %v2967 = vpack.c.bf16 %v2948, %v2948
    %v2968 = vpack.c.bf16 %v2956, %v2956
    %v2973 = vcombine.low %v2689, %v2691
    %v2974 = vcombine.high %v2689, %v2691
    %v2975 = vcombine.low %v2771, %v2773
    %v2976 = vcombine.high %v2771, %v2773
    %v2981 = vcombine.high %v2973, %v2973
    %v2982 = vcombine.high %v2975, %v2975
    %v2983 = vcombine.high %v2974, %v2974
    %v2984 = vcombine.high %v2976, %v2976
    %v2989 = vpack.c.bf16 %v2973, %v2973
    %v2990 = vpack.c.bf16 %v2981, %v2981
    %v2991 = vpack.c.bf16 %v2975, %v2975
    %v2992 = vpack.c.bf16 %v2982, %v2982
    %v2993 = vpack.c.bf16 %v2974, %v2974
    %v2994 = vpack.c.bf16 %v2983, %v2983
    %v2995 = vpack.c.bf16 %v2976, %v2976
    %v2996 = vpack.c.bf16 %v2984, %v2984
    %v3001 = vcombine.low %v2853, %v2855
    %v3002 = vcombine.high %v2853, %v2855
    %v3003 = vcombine.low %v2935, %v2937
    %v3004 = vcombine.high %v2935, %v2937
    %v3009 = vcombine.high %v3001, %v3001
    %v3010 = vcombine.high %v3003, %v3003
    %v3011 = vcombine.high %v3002, %v3002
    %v3012 = vcombine.high %v3004, %v3004
    %v3017 = vpack.c.bf16 %v3001, %v3001
    %v3018 = vpack.c.bf16 %v3009, %v3009
    %v3019 = vpack.c.bf16 %v3003, %v3003
    %v3020 = vpack.c.bf16 %v3010, %v3010
    %v3021 = vpack.c.bf16 %v3002, %v3002
    %v3022 = vpack.c.bf16 %v3011, %v3011
    %v3023 = vpack.c.bf16 %v3004, %v3004
    %v3024 = vpack.c.bf16 %v3012, %v3012
    %3025 = vmatprep.subr.bf16.mxu0 %v2962
    %3026 = vmatpush1.bf16.xpose.msra.mxu0 %v2961
    %3027 = vmatprep.subr.bf16.mxu0 0
    %3028 = vmatpush1.bf16.xpose.msra.mxu0 0
    %3029 = vmatprep.subr.bf16.mxu0 0
    %3030 = vmatpush1.bf16.xpose.msra.mxu0 0
    %3031 = vmatprep.subr.bf16.mxu0 0
    %3032 = vmatpush1.bf16.xpose.msra.mxu0 0
    %3033 = vmatprep.subr.bf16.mxu0 0
    %3034 = vmatpush1.bf16.xpose.msra.mxu0 0
    %3035 = vmatprep.subr.bf16.mxu0 0
    %3036 = vmatpush1.bf16.xpose.msra.mxu0 0
    %3037 = vmatprep.subr.bf16.mxu0 0
    %3038 = vmatpush1.bf16.xpose.msra.mxu0 0
    %3039 = vmatprep.subr.bf16.mxu0 0
    %3040 = vmatpush1.bf16.xpose.msra.mxu0 0
    %3041 = vmatprep.subr.bf16.mxu0 0
    %3042 = vmatpush1.bf16.xpose.msra.mxu0 0
    %3043 = vmatprep.subr.bf16.mxu0 0
    %3044 = vmatpush1.bf16.xpose.msra.mxu0 0
    %3045 = vmatprep.subr.bf16.mxu0 0
    %3046 = vmatpush1.bf16.xpose.msra.mxu0 0
    %3047 = vmatprep.subr.bf16.mxu0 0
    %3048 = vmatpush1.bf16.xpose.msra.mxu0 0
    %3049 = vmatprep.subr.bf16.mxu0 0
    %3050 = vmatpush1.bf16.xpose.msra.mxu0 0
    %3051 = vmatprep.subr.bf16.mxu0 0
    %3052 = vmatpush1.bf16.xpose.msra.mxu0 0
    %3053 = vmatprep.subr.bf16.mxu0 0
    %3054 = vmatpush1.bf16.xpose.msra.mxu0 0
    %3055 = vmatprep.subr.bf16.mxu0 0
    %3056 = vmatpush1.bf16.xpose.msra.mxu0 0
    %3057 = vmatprep.mubr.bf16.mxu0 %v2990
    %3058 = vmatmul.mubr.bf16.gmra.mrb[0].mxu0 %v2989
    %v3059 = vpop.f32.mrb[0].mxu0
    %v3060 = vadd.f32 0.0, %v3059
    %v3061 = vpop.f32.mrb[0].mxu0
    %v3062 = vpop.f32.mrb[0].mxu0
    %v3063 = vpop.f32.mrb[0].mxu0
    %3064 = vdwg.mxu0
    %3065 = vmatprep.subr.bf16.mxu0 %v2964
    %3066 = vmatpush1.bf16.xpose.msra.mxu0 %v2963
    %3067 = vmatprep.subr.bf16.mxu0 0
    %3068 = vmatpush1.bf16.xpose.msra.mxu0 0
    %3069 = vmatprep.subr.bf16.mxu0 0
    %3070 = vmatpush1.bf16.xpose.msra.mxu0 0
    %3071 = vmatprep.subr.bf16.mxu0 0
    %3072 = vmatpush1.bf16.xpose.msra.mxu0 0
    %3073 = vmatprep.subr.bf16.mxu0 0
    %3074 = vmatpush1.bf16.xpose.msra.mxu0 0
    %3075 = vmatprep.subr.bf16.mxu0 0
    %3076 = vmatpush1.bf16.xpose.msra.mxu0 0
    %3077 = vmatprep.subr.bf16.mxu0 0
    %3078 = vmatpush1.bf16.xpose.msra.mxu0 0
    %3079 = vmatprep.subr.bf16.mxu0 0
    %3080 = vmatpush1.bf16.xpose.msra.mxu0 0
    %3081 = vmatprep.subr.bf16.mxu0 0
    %3082 = vmatpush1.bf16.xpose.msra.mxu0 0
    %3083 = vmatprep.subr.bf16.mxu0 0
    %3084 = vmatpush1.bf16.xpose.msra.mxu0 0
    %3085 = vmatprep.subr.bf16.mxu0 0
    %3086 = vmatpush1.bf16.xpose.msra.mxu0 0
    %3087 = vmatprep.subr.bf16.mxu0 0
    %3088 = vmatpush1.bf16.xpose.msra.mxu0 0
    %3089 = vmatprep.subr.bf16.mxu0 0
    %3090 = vmatpush1.bf16.xpose.msra.mxu0 0
    %3091 = vmatprep.subr.bf16.mxu0 0
    %3092 = vmatpush1.bf16.xpose.msra.mxu0 0
    %3093 = vmatprep.subr.bf16.mxu0 0
    %3094 = vmatpush1.bf16.xpose.msra.mxu0 0
    %3095 = vmatprep.subr.bf16.mxu0 0
    %3096 = vmatpush1.bf16.xpose.msra.mxu0 0
    %3097 = vmatprep.mubr.bf16.mxu0 %v2992
    %3098 = vmatmul.mubr.bf16.gmra.mrb[0].mxu0 %v2991
    %v3099 = vpop.f32.mrb[0].mxu0
    %v3100 = vadd.f32 %v3060, %v3099
    %v3101 = vpop.f32.mrb[0].mxu0
    %v3102 = vpop.f32.mrb[0].mxu0
    %v3103 = vpop.f32.mrb[0].mxu0
    %3104 = vdwg.mxu0
    %3105 = vmatprep.subr.bf16.mxu0 %v2966
    %3106 = vmatpush1.bf16.xpose.msra.mxu0 %v2965
    %3107 = vmatprep.subr.bf16.mxu0 0
    %3108 = vmatpush1.bf16.xpose.msra.mxu0 0
    %3109 = vmatprep.subr.bf16.mxu0 0
    %3110 = vmatpush1.bf16.xpose.msra.mxu0 0
    %3111 = vmatprep.subr.bf16.mxu0 0
    %3112 = vmatpush1.bf16.xpose.msra.mxu0 0
    %3113 = vmatprep.subr.bf16.mxu0 0
    %3114 = vmatpush1.bf16.xpose.msra.mxu0 0
    %3115 = vmatprep.subr.bf16.mxu0 0
    %3116 = vmatpush1.bf16.xpose.msra.mxu0 0
    %3117 = vmatprep.subr.bf16.mxu0 0
    %3118 = vmatpush1.bf16.xpose.msra.mxu0 0
    %3119 = vmatprep.subr.bf16.mxu0 0
    %3120 = vmatpush1.bf16.xpose.msra.mxu0 0
    %3121 = vmatprep.subr.bf16.mxu0 0
    %3122 = vmatpush1.bf16.xpose.msra.mxu0 0
    %3123 = vmatprep.subr.bf16.mxu0 0
    %3124 = vmatpush1.bf16.xpose.msra.mxu0 0
    %3125 = vmatprep.subr.bf16.mxu0 0
    %3126 = vmatpush1.bf16.xpose.msra.mxu0 0
    %3127 = vmatprep.subr.bf16.mxu0 0
    %3128 = vmatpush1.bf16.xpose.msra.mxu0 0
    %3129 = vmatprep.subr.bf16.mxu0 0
    %3130 = vmatpush1.bf16.xpose.msra.mxu0 0
    %3131 = vmatprep.subr.bf16.mxu0 0
    %3132 = vmatpush1.bf16.xpose.msra.mxu0 0
    %3133 = vmatprep.subr.bf16.mxu0 0
    %3134 = vmatpush1.bf16.xpose.msra.mxu0 0
    %3135 = vmatprep.subr.bf16.mxu0 0
    %3136 = vmatpush1.bf16.xpose.msra.mxu0 0
    %3137 = vmatprep.mubr.bf16.mxu0 %v2994
    %3138 = vmatmul.mubr.bf16.gmra.mrb[0].mxu0 %v2993
    %v3139 = vpop.f32.mrb[0].mxu0
    %v3140 = vadd.f32 0.0, %v3139
    %v3141 = vpop.f32.mrb[0].mxu0
    %v3142 = vpop.f32.mrb[0].mxu0
    %v3143 = vpop.f32.mrb[0].mxu0
    %3144 = vdwg.mxu0
    %3145 = vmatprep.subr.bf16.mxu0 %v2968
    %3146 = vmatpush1.bf16.xpose.msra.mxu0 %v2967
    %3147 = vmatprep.subr.bf16.mxu0 0
    %3148 = vmatpush1.bf16.xpose.msra.mxu0 0
    %3149 = vmatprep.subr.bf16.mxu0 0
    %3150 = vmatpush1.bf16.xpose.msra.mxu0 0
    %3151 = vmatprep.subr.bf16.mxu0 0
    %3152 = vmatpush1.bf16.xpose.msra.mxu0 0
    %3153 = vmatprep.subr.bf16.mxu0 0
    %3154 = vmatpush1.bf16.xpose.msra.mxu0 0
    %3155 = vmatprep.subr.bf16.mxu0 0
    %3156 = vmatpush1.bf16.xpose.msra.mxu0 0
    %3157 = vmatprep.subr.bf16.mxu0 0
    %3158 = vmatpush1.bf16.xpose.msra.mxu0 0
    %3159 = vmatprep.subr.bf16.mxu0 0
    %3160 = vmatpush1.bf16.xpose.msra.mxu0 0
    %3161 = vmatprep.subr.bf16.mxu0 0
    %3162 = vmatpush1.bf16.xpose.msra.mxu0 0
    %3163 = vmatprep.subr.bf16.mxu0 0
    %3164 = vmatpush1.bf16.xpose.msra.mxu0 0
    %3165 = vmatprep.subr.bf16.mxu0 0
    %3166 = vmatpush1.bf16.xpose.msra.mxu0 0
    %3167 = vmatprep.subr.bf16.mxu0 0
    %3168 = vmatpush1.bf16.xpose.msra.mxu0 0
    %3169 = vmatprep.subr.bf16.mxu0 0
    %3170 = vmatpush1.bf16.xpose.msra.mxu0 0
    %3171 = vmatprep.subr.bf16.mxu0 0
    %3172 = vmatpush1.bf16.xpose.msra.mxu0 0
    %3173 = vmatprep.subr.bf16.mxu0 0
    %3174 = vmatpush1.bf16.xpose.msra.mxu0 0
    %3175 = vmatprep.subr.bf16.mxu0 0
    %3176 = vmatpush1.bf16.xpose.msra.mxu0 0
    %3177 = vmatprep.mubr.bf16.mxu0 %v2996
    %3178 = vmatmul.mubr.bf16.gmra.mrb[0].mxu0 %v2995
    %v3179 = vpop.f32.mrb[0].mxu0
    %v3180 = vadd.f32 %v3140, %v3179
    %v3181 = vpop.f32.mrb[0].mxu0
    %v3182 = vpop.f32.mrb[0].mxu0
    %v3183 = vpop.f32.mrb[0].mxu0
    %3184 = vdwg.mxu0
    %vm3185 = vcmask 27648
    %v3186 = vsel %vm3185, %v3100, -inf
    %3187 = vmax.xlane.f32.xlu0 %v3186
    %v3188 = vpop.xlane.xlu0 %3187
    %v3189 = vsel %vm3185, %v3180, -inf
    %3190 = vmax.xlane.f32.xlu0 %v3189
    %v3191 = vpop.xlane.xlu0 %3190
    %v3192 = vsub.f32 %v3100, %v3188
    %v3193 = vsub.f32 %v3180, %v3191
    %v3194 = vmul.f32 %v3192, 1.442695
    %v3195 = vpow.pop %v3194
    %v3196 = vmul.f32 %v3193, 1.442695
    %v3197 = vpow.pop %v3196
    %v3198 = vsel %vm3185, %v3195, 0.0
    %3199 = vadd.xlane.f32.xlu0 %v3198
    %v3200 = vpop.xlane.xlu0 %3199
    %v3201 = vsel %vm3185, %v3197, 0.0
    %3202 = vadd.xlane.f32.xlu0 %v3201
    %v3203 = vpop.xlane.xlu0 %3202
    %v3204 = vrcp.pop %v3200
    %v3205 = vrcp.pop %v3203
    %v3206 = vmul.f32 %v3195, %v3204
    %v3207 = vmul.f32 %v3197, %v3205
    %v3208 = vpack.c.bf16 %v3206, %v3206
    %v3209 = vpack.c.bf16 %v3207, %v3207
    %3210 = vxpose.xlu0.c.b16.start [1/8] %v3208, 128
    %3211 = vxpose.xlu0.c.b16.cont [2/8] 0, 128
    %3212 = vxpose.xlu0.c.b16.cont [3/8] 0, 128
    %3213 = vxpose.xlu0.c.b16.cont [4/8] 0, 128
    %3214 = vxpose.xlu0.c.b16.cont [5/8] 0, 128
    %3215 = vxpose.xlu0.c.b16.cont [6/8] 0, 128
    %3216 = vxpose.xlu0.c.b16.cont [7/8] 0, 128
    %3217 = vxpose.xlu0.c.b16.end [8/8] 0, 128
    %v3218 = vpop.trf.xlu0
    %v3219 = vpop.trf.xlu0
    %v3220 = vpop.trf.xlu0
    %v3221 = vpop.trf.xlu0
    %v3222 = vpop.trf.xlu0
    %v3223 = vpop.trf.xlu0
    %v3224 = vpop.trf.xlu0
    %v3225 = vpop.trf.xlu0
    %vm3226 = vcmask 31744
    %v3228 = vsel %vm3226, %v3218, 0
    %vm3230 = vcmask 1041408
    %v3232 = vsel %vm3230, %v3017, 0
    %v3235 = vsel %vm3230, %v3018, 0
    %v3238 = vsel %vm3230, %v3019, 0
    %v3241 = vsel %vm3230, %v3020, 0
    %3243 = vmatprep.subr.bf16.mxu0 %v3235
    %3244 = vmatpush1.bf16.msra.mxu0 %v3232
    %3245 = vmatprep.subr.bf16.mxu0 0
    %3246 = vmatpush1.bf16.msra.mxu0 0
    %3247 = vmatprep.subr.bf16.mxu0 0
    %3248 = vmatpush1.bf16.msra.mxu0 0
    %3249 = vmatprep.subr.bf16.mxu0 0
    %3250 = vmatpush1.bf16.msra.mxu0 0
    %3251 = vmatprep.subr.bf16.mxu0 0
    %3252 = vmatpush1.bf16.msra.mxu0 0
    %3253 = vmatprep.subr.bf16.mxu0 0
    %3254 = vmatpush1.bf16.msra.mxu0 0
    %3255 = vmatprep.subr.bf16.mxu0 0
    %3256 = vmatpush1.bf16.msra.mxu0 0
    %3257 = vmatprep.subr.bf16.mxu0 0
    %3258 = vmatpush1.bf16.msra.mxu0 0
    %3259 = vmatprep.subr.bf16.mxu0 0
    %3260 = vmatpush1.bf16.msra.mxu0 0
    %3261 = vmatprep.subr.bf16.mxu0 0
    %3262 = vmatpush1.bf16.msra.mxu0 0
    %3263 = vmatprep.subr.bf16.mxu0 0
    %3264 = vmatpush1.bf16.msra.mxu0 0
    %3265 = vmatprep.subr.bf16.mxu0 0
    %3266 = vmatpush1.bf16.msra.mxu0 0
    %3267 = vmatprep.subr.bf16.mxu0 0
    %3268 = vmatpush1.bf16.msra.mxu0 0
    %3269 = vmatprep.subr.bf16.mxu0 0
    %3270 = vmatpush1.bf16.msra.mxu0 0
    %3271 = vmatprep.subr.bf16.mxu0 0
    %3272 = vmatpush1.bf16.msra.mxu0 0
    %3273 = vmatprep.subr.bf16.mxu0 0
    %3274 = vmatpush1.bf16.msra.mxu0 0
    %3275 = vmatprep.mubr.bf16.mxu0 0
    %3276 = vmatmul.mubr.bf16.gmra.mrb[0].mxu0 %v3228
    %v3277 = vpop.f32.mrb[0].mxu0
    %v3278 = vadd.f32 0.0, %v3277
    %v3279 = vpop.f32.mrb[0].mxu0
    %v3280 = vadd.f32 0.0, %v3279
    %v3281 = vpop.f32.mrb[0].mxu0
    %v3282 = vpop.f32.mrb[0].mxu0
    %3283 = vdwg.mxu0
    %3284 = vmatprep.subr.bf16.mxu0 %v3241
    %3285 = vmatpush1.bf16.msra.mxu0 %v3238
    %3286 = vmatprep.subr.bf16.mxu0 0
    %3287 = vmatpush1.bf16.msra.mxu0 0
    %3288 = vmatprep.subr.bf16.mxu0 0
    %3289 = vmatpush1.bf16.msra.mxu0 0
    %3290 = vmatprep.subr.bf16.mxu0 0
    %3291 = vmatpush1.bf16.msra.mxu0 0
    %3292 = vmatprep.subr.bf16.mxu0 0
    %3293 = vmatpush1.bf16.msra.mxu0 0
    %3294 = vmatprep.subr.bf16.mxu0 0
    %3295 = vmatpush1.bf16.msra.mxu0 0
    %3296 = vmatprep.subr.bf16.mxu0 0
    %3297 = vmatpush1.bf16.msra.mxu0 0
    %3298 = vmatprep.subr.bf16.mxu0 0
    %3299 = vmatpush1.bf16.msra.mxu0 0
    %3300 = vmatprep.subr.bf16.mxu0 0
    %3301 = vmatpush1.bf16.msra.mxu0 0
    %3302 = vmatprep.subr.bf16.mxu0 0
    %3303 = vmatpush1.bf16.msra.mxu0 0
    %3304 = vmatprep.subr.bf16.mxu0 0
    %3305 = vmatpush1.bf16.msra.mxu0 0
    %3306 = vmatprep.subr.bf16.mxu0 0
    %3307 = vmatpush1.bf16.msra.mxu0 0
    %3308 = vmatprep.subr.bf16.mxu0 0
    %3309 = vmatpush1.bf16.msra.mxu0 0
    %3310 = vmatprep.subr.bf16.mxu0 0
    %3311 = vmatpush1.bf16.msra.mxu0 0
    %3312 = vmatprep.subr.bf16.mxu0 0
    %3313 = vmatpush1.bf16.msra.mxu0 0
    %3314 = vmatprep.subr.bf16.mxu0 0
    %3315 = vmatpush1.bf16.msra.mxu0 0
    %3316 = vmatprep.mubr.bf16.mxu0 0
    %3317 = vmatmul.mubr.bf16.gmra.mrb[0].mxu0 %v3228
    %v3318 = vpop.f32.mrb[0].mxu0
    %v3319 = vadd.f32 0.0, %v3318
    %v3320 = vpop.f32.mrb[0].mxu0
    %v3321 = vadd.f32 0.0, %v3320
    %v3322 = vpop.f32.mrb[0].mxu0
    %v3323 = vpop.f32.mrb[0].mxu0
    %3324 = vdwg.mxu0
    %3325 = vxpose.xlu0.c.b16.start [1/8] %v3209, 128
    %3326 = vxpose.xlu0.c.b16.cont [2/8] 0, 128
    %3327 = vxpose.xlu0.c.b16.cont [3/8] 0, 128
    %3328 = vxpose.xlu0.c.b16.cont [4/8] 0, 128
    %3329 = vxpose.xlu0.c.b16.cont [5/8] 0, 128
    %3330 = vxpose.xlu0.c.b16.cont [6/8] 0, 128
    %3331 = vxpose.xlu0.c.b16.cont [7/8] 0, 128
    %3332 = vxpose.xlu0.c.b16.end [8/8] 0, 128
    %v3333 = vpop.trf.xlu0
    %v3334 = vpop.trf.xlu0
    %v3335 = vpop.trf.xlu0
    %v3336 = vpop.trf.xlu0
    %v3337 = vpop.trf.xlu0
    %v3338 = vpop.trf.xlu0
    %v3339 = vpop.trf.xlu0
    %v3340 = vpop.trf.xlu0
    %v3342 = vsel %vm3226, %v3333, 0
    %v3345 = vsel %vm3230, %v3021, 0
    %v3348 = vsel %vm3230, %v3022, 0
    %v3351 = vsel %vm3230, %v3023, 0
    %v3354 = vsel %vm3230, %v3024, 0
    %3356 = vmatprep.subr.bf16.mxu0 %v3348
    %3357 = vmatpush1.bf16.msra.mxu0 %v3345
    %3358 = vmatprep.subr.bf16.mxu0 0
    %3359 = vmatpush1.bf16.msra.mxu0 0
    %3360 = vmatprep.subr.bf16.mxu0 0
    %3361 = vmatpush1.bf16.msra.mxu0 0
    %3362 = vmatprep.subr.bf16.mxu0 0
    %3363 = vmatpush1.bf16.msra.mxu0 0
    %3364 = vmatprep.subr.bf16.mxu0 0
    %3365 = vmatpush1.bf16.msra.mxu0 0
    %3366 = vmatprep.subr.bf16.mxu0 0
    %3367 = vmatpush1.bf16.msra.mxu0 0
    %3368 = vmatprep.subr.bf16.mxu0 0
    %3369 = vmatpush1.bf16.msra.mxu0 0
    %3370 = vmatprep.subr.bf16.mxu0 0
    %3371 = vmatpush1.bf16.msra.mxu0 0
    %3372 = vmatprep.subr.bf16.mxu0 0
    %3373 = vmatpush1.bf16.msra.mxu0 0
    %3374 = vmatprep.subr.bf16.mxu0 0
    %3375 = vmatpush1.bf16.msra.mxu0 0
    %3376 = vmatprep.subr.bf16.mxu0 0
    %3377 = vmatpush1.bf16.msra.mxu0 0
    %3378 = vmatprep.subr.bf16.mxu0 0
    %3379 = vmatpush1.bf16.msra.mxu0 0
    %3380 = vmatprep.subr.bf16.mxu0 0
    %3381 = vmatpush1.bf16.msra.mxu0 0
    %3382 = vmatprep.subr.bf16.mxu0 0
    %3383 = vmatpush1.bf16.msra.mxu0 0
    %3384 = vmatprep.subr.bf16.mxu0 0
    %3385 = vmatpush1.bf16.msra.mxu0 0
    %3386 = vmatprep.subr.bf16.mxu0 0
    %3387 = vmatpush1.bf16.msra.mxu0 0
    %3388 = vmatprep.mubr.bf16.mxu0 0
    %3389 = vmatmul.mubr.bf16.gmra.mrb[0].mxu0 %v3342
    %v3390 = vpop.f32.mrb[0].mxu0
    %v3391 = vadd.f32 0.0, %v3390
    %v3392 = vpop.f32.mrb[0].mxu0
    %v3393 = vadd.f32 0.0, %v3392
    %v3394 = vpop.f32.mrb[0].mxu0
    %v3395 = vpop.f32.mrb[0].mxu0
    %3396 = vdwg.mxu0
    %3397 = vmatprep.subr.bf16.mxu0 %v3354
    %3398 = vmatpush1.bf16.msra.mxu0 %v3351
    %3399 = vmatprep.subr.bf16.mxu0 0
    %3400 = vmatpush1.bf16.msra.mxu0 0
    %3401 = vmatprep.subr.bf16.mxu0 0
    %3402 = vmatpush1.bf16.msra.mxu0 0
    %3403 = vmatprep.subr.bf16.mxu0 0
    %3404 = vmatpush1.bf16.msra.mxu0 0
    %3405 = vmatprep.subr.bf16.mxu0 0
    %3406 = vmatpush1.bf16.msra.mxu0 0
    %3407 = vmatprep.subr.bf16.mxu0 0
    %3408 = vmatpush1.bf16.msra.mxu0 0
    %3409 = vmatprep.subr.bf16.mxu0 0
    %3410 = vmatpush1.bf16.msra.mxu0 0
    %3411 = vmatprep.subr.bf16.mxu0 0
    %3412 = vmatpush1.bf16.msra.mxu0 0
    %3413 = vmatprep.subr.bf16.mxu0 0
    %3414 = vmatpush1.bf16.msra.mxu0 0
    %3415 = vmatprep.subr.bf16.mxu0 0
    %3416 = vmatpush1.bf16.msra.mxu0 0
    %3417 = vmatprep.subr.bf16.mxu0 0
    %3418 = vmatpush1.bf16.msra.mxu0 0
    %3419 = vmatprep.subr.bf16.mxu0 0
    %3420 = vmatpush1.bf16.msra.mxu0 0
    %3421 = vmatprep.subr.bf16.mxu0 0
    %3422 = vmatpush1.bf16.msra.mxu0 0
    %3423 = vmatprep.subr.bf16.mxu0 0
    %3424 = vmatpush1.bf16.msra.mxu0 0
    %3425 = vmatprep.subr.bf16.mxu0 0
    %3426 = vmatpush1.bf16.msra.mxu0 0
    %3427 = vmatprep.subr.bf16.mxu0 0
    %3428 = vmatpush1.bf16.msra.mxu0 0
    %3429 = vmatprep.mubr.bf16.mxu0 0
    %3430 = vmatmul.mubr.bf16.gmra.mrb[0].mxu0 %v3342
    %v3431 = vpop.f32.mrb[0].mxu0
    %v3432 = vadd.f32 0.0, %v3431
    %v3433 = vpop.f32.mrb[0].mxu0
    %v3434 = vadd.f32 0.0, %v3433
    %v3435 = vpop.f32.mrb[0].mxu0
    %v3436 = vpop.f32.mrb[0].mxu0
    %3437 = vdwg.mxu0
    %vm3438 = vcmask 1043456
    %v3439 = vsel %vm3438, %v3278, 0.0
    %v3440 = vrot.slane %v3439, 4
    %v3441 = vadd.f32 %v3439, %v3440
    %v3442 = vrot.slane %v3441, 2
    %v3443 = vadd.f32 %v3441, %v3442
    %v3444 = vrot.slane %v3443, 1
    %v3445 = vadd.f32 %v3443, %v3444
    %v3446 = vsel %vm3438, %v3280, 0.0
    %v3447 = vrot.slane %v3446, 4
    %v3448 = vadd.f32 %v3446, %v3447
    %v3449 = vrot.slane %v3448, 2
    %v3450 = vadd.f32 %v3448, %v3449
    %v3451 = vrot.slane %v3450, 1
    %v3452 = vadd.f32 %v3450, %v3451
    %v3453 = vsel %vm3438, %v3319, 0.0
    %v3454 = vrot.slane %v3453, 4
    %v3455 = vadd.f32 %v3453, %v3454
    %v3456 = vrot.slane %v3455, 2
    %v3457 = vadd.f32 %v3455, %v3456
    %v3458 = vrot.slane %v3457, 1
    %v3459 = vadd.f32 %v3457, %v3458
    %v3460 = vsel %vm3438, %v3321, 0.0
    %v3461 = vrot.slane %v3460, 4
    %v3462 = vadd.f32 %v3460, %v3461
    %v3463 = vrot.slane %v3462, 2
    %v3464 = vadd.f32 %v3462, %v3463
    %v3465 = vrot.slane %v3464, 1
    %v3466 = vadd.f32 %v3464, %v3465
    %v3467 = vsel %vm3438, %v3391, 0.0
    %v3468 = vrot.slane %v3467, 4
    %v3469 = vadd.f32 %v3467, %v3468
    %v3470 = vrot.slane %v3469, 2
    %v3471 = vadd.f32 %v3469, %v3470
    %v3472 = vrot.slane %v3471, 1
    %v3473 = vadd.f32 %v3471, %v3472
    %v3474 = vsel %vm3438, %v3393, 0.0
    %v3475 = vrot.slane %v3474, 4
    %v3476 = vadd.f32 %v3474, %v3475
    %v3477 = vrot.slane %v3476, 2
    %v3478 = vadd.f32 %v3476, %v3477
    %v3479 = vrot.slane %v3478, 1
    %v3480 = vadd.f32 %v3478, %v3479
    %v3481 = vsel %vm3438, %v3432, 0.0
    %v3482 = vrot.slane %v3481, 4
    %v3483 = vadd.f32 %v3481, %v3482
    %v3484 = vrot.slane %v3483, 2
    %v3485 = vadd.f32 %v3483, %v3484
    %v3486 = vrot.slane %v3485, 1
    %v3487 = vadd.f32 %v3485, %v3486
    %v3488 = vsel %vm3438, %v3434, 0.0
    %v3489 = vrot.slane %v3488, 4
    %v3490 = vadd.f32 %v3488, %v3489
    %v3491 = vrot.slane %v3490, 2
    %v3492 = vadd.f32 %v3490, %v3491
    %v3493 = vrot.slane %v3492, 1
    %v3494 = vadd.f32 %v3492, %v3493
    %v3495 = vmul.f32 %v3445, 0.25
    %v3496 = vmul.f32 %v3452, 0.25
    %v3497 = vmul.f32 %v3459, 0.25
    %v3498 = vmul.f32 %v3466, 0.25
    %v3499 = vmul.f32 %v3473, 0.25
    %v3500 = vmul.f32 %v3480, 0.25
    %v3501 = vmul.f32 %v3487, 0.25
    %v3502 = vmul.f32 %v3494, 0.25
    %v3511 = vcombine.low %v3495, %v3496
    %v3512 = vcombine.low %v3497, %v3498
    %v3514 = vunpack.c.l.s4 1983009808
    %v3515 = vunpack.c.0.s8 %v3514
    %v3516 = vlaneseq
    %v3517 = vshrl.u32 %v3516, 7
    %v3518 = vsub.s32 %v3515, %v3517
    %v3519 = vrot.slane %v3511, %v3518
    %v3521 = vunpack.c.l.s4 1983009808
    %v3522 = vunpack.c.0.s8 %v3521
    %v3523 = vlaneseq
    %v3524 = vshrl.u32 %v3523, 7
    %v3525 = vsub.s32 %v3522, %v3524
    %v3526 = vrot.slane %v3512, %v3525
    %v3527 = vcombine.low %v3519, %v3526
    %v3528 = vcombine.low %v3499, %v3500
    %v3529 = vcombine.low %v3501, %v3502
    %v3531 = vunpack.c.l.s4 1983009808
    %v3532 = vunpack.c.0.s8 %v3531
    %v3533 = vlaneseq
    %v3534 = vshrl.u32 %v3533, 7
    %v3535 = vsub.s32 %v3532, %v3534
    %v3536 = vrot.slane %v3528, %v3535
    %v3538 = vunpack.c.l.s4 1983009808
    %v3539 = vunpack.c.0.s8 %v3538
    %v3540 = vlaneseq
    %v3541 = vshrl.u32 %v3540, 7
    %v3542 = vsub.s32 %v3539, %v3541
    %v3543 = vrot.slane %v3529, %v3542
    %v3544 = vcombine.low %v3536, %v3543
    %vm3545 = vcmask 1044484
    %v3546 = vsel %vm3545, %v3527, %v3527
    %vm3547 = vcmask 1046534
    %v3548 = vsel %vm3547, %v3527, %v3546
    %v3549 = vrot.slane %v3544, 7
    %vm3550 = vcmask 1041409
    %v3551 = vsel %vm3550, %v3549, %v3548
    %vm3552 = vcmask 1043459
    %v3553 = vsel %vm3552, %v3549, %v3551
    %vm3554 = vcmask 1045509
    %v3555 = vsel %vm3554, %v3549, %v3553
    %vm3556 = vcmask 1047559
    %v3557 = vsel %vm3556, %v3549, %v3555
    %3559 = vst [vmem:[#allocation8] sm:$0xff] %v3557
    // Predicated region
    $region26: #{tpu_custom_call.1} parent=1 // pred_check
      _
    $region27: #{tpu_custom_call.1} parent=1 // pred_check_branch
      %3561 = sbr.rel (0) target = $region29
    $region28: #{tpu_custom_call.1} parent=1 // pred_region
      %s3563 = ssub.s32 128, 128
      %3564 = vsyncadd [#allocation4], %s3563
      %s3566 = sshll.u32 [#allocation8], 4
      %s3567 = int_to_ptr.vmem [resolvable:$true] %s3566
      %3569 = dma.vmem_to_hbm [thread:$0]  %s3567, 128, %s3, [#allocation4]
    $region29: #{tpu_custom_call.1} parent=1 // pred_fallthru
      _
    // Predicated region
    $region30: #{tpu_custom_call.1} parent=1 // pred_check
      _
    $region31: #{tpu_custom_call.1} parent=1 // pred_check_branch
      %3571 = sbr.rel (0) target = $region33
    $region32: #{tpu_custom_call.1} parent=1 // pred_region
      %3572 = dma.done [#allocation4], 128
    $region33: #{tpu_custom_call.1} parent=1 // pred_fallthru
      _
    %3573 = vsyncpa [#allocation3], 1
    %3574 = vsyncpa [#allocation6], 1
    %3575 = vsyncpa [#allocation4], 1

</llo_original>
